<compile_context>
chip_gen: v5e
topology: v5e:2x2
jax: 0.10.0
libtpu: 0.0.40
codegen_flags: <defaults>
</compile_context>

<pallas_src>
import math

import jax
import jax.numpy as jnp
from jax.experimental import pallas as pl
from jax.experimental.pallas import tpu as pltpu


# --------------------------------------------------------------------------
# Kernels: grid = (N,), one batch element per grid step ("parallel").
# --------------------------------------------------------------------------
def _se_fusion_kernel(rgb_ref, mask_ref, w_rgb_ref, b_rgb_ref,
                      w_mask_ref, b_mask_ref, out_ref):
    f32 = jnp.float32
    x_r = rgb_ref[0]                                     # (C, HW) f32
    x_m = mask_ref[0]

    # AdaptiveAvgPool2d(1): mean over the spatial (lane) axis -> (C, 1)
    p_r = jnp.mean(x_r, axis=1, keepdims=True)
    p_m = jnp.mean(x_m, axis=1, keepdims=True)

    # 1x1 conv on the pooled vector == (C,C) @ (C,1) MXU matmul + bias,
    # then Sigmoid.  bf16 MXU inputs, f32 accumulation.
    att_r = jax.nn.sigmoid(
        jnp.dot(w_rgb_ref[...], p_r.astype(jnp.bfloat16),
                preferred_element_type=f32) + b_rgb_ref[...])
    att_m = jax.nn.sigmoid(
        jnp.dot(w_mask_ref[...], p_m.astype(jnp.bfloat16),
                preferred_element_type=f32) + b_mask_ref[...])

    # Per-channel gating + fusion (VPU, memory bound); lane-dense store.
    out_ref[0] = x_r * att_r + x_m * att_m


def _add_fusion_kernel(rgb_ref, mask_ref, out_ref):
    out_ref[...] = rgb_ref[...] + mask_ref[...]


# --------------------------------------------------------------------------
# Parameters (deterministic) and wrapper.
# --------------------------------------------------------------------------
def make_params(key, planes):
    k1, k2, k3, k4 = jax.random.split(key, 4)
    std = 1.0 / math.sqrt(planes)                 # fan_in of a 1x1 conv
    w_rgb = std * jax.random.normal(k1, (planes, planes), jnp.float32)
    w_mask = std * jax.random.normal(k2, (planes, planes), jnp.float32)
    b_rgb = std * jax.random.uniform(k3, (planes,), jnp.float32, -1.0, 1.0)
    b_mask = std * jax.random.uniform(k4, (planes,), jnp.float32, -1.0, 1.0)
    return dict(w_rgb=w_rgb, b_rgb=b_rgb, w_mask=w_mask, b_mask=b_mask)


def fusion_forward(f_rgb, f_mask, params=None, fusion_type="se"):
    """Fusion.forward(f_rgb, f_mask) for fusion_type in {'se', 'add'}."""
    assert f_rgb.shape == f_mask.shape, (f_rgb.shape, f_mask.shape)
    N, C, H, W = f_rgb.shape
    HW = H * W
    rgb = f_rgb.reshape(N, C, HW).astype(jnp.float32)
    mask = f_mask.reshape(N, C, HW).astype(jnp.float32)

    act_spec = pl.BlockSpec((1, C, HW), lambda n: (n, 0, 0))
    compiler_params = pltpu.CompilerParams(
        dimension_semantics=("parallel",),        # shard batch across v7x TCs
        vmem_limit_bytes=32 * 1024 * 1024,        # headroom on v7x (64 MiB VMEM)
    )

    if fusion_type == "add":
        out = pl.pallas_call(
            _add_fusion_kernel,
            out_shape=jax.ShapeDtypeStruct((N, C, HW), jnp.float32),
            grid_spec=pltpu.PrefetchScalarGridSpec(
                num_scalar_prefetch=0,
                grid=(N,),
                in_specs=[act_spec, act_spec],
                out_specs=act_spec,
            ),
            compiler_params=compiler_params,
        )(rgb, mask)
        return out.reshape(N, C, H, W)

    if fusion_type != "se":
        raise NotImplementedError(fusion_type)

    # Pack SE weights once: bf16 (halves DMA/VMEM), bias as (C, 1) f32.
    w_rgb = params["w_rgb"].astype(jnp.bfloat16)
    w_mask = params["w_mask"].astype(jnp.bfloat16)
    b_rgb = params["b_rgb"].reshape(C, 1).astype(jnp.float32)
    b_mask = params["b_mask"].reshape(C, 1).astype(jnp.float32)

    w_spec = pl.BlockSpec((C, C), lambda n: (0, 0))
    b_spec = pl.BlockSpec((C, 1), lambda n: (0, 0))

    out = pl.pallas_call(
        _se_fusion_kernel,
        out_shape=jax.ShapeDtypeStruct((N, C, HW), jnp.float32),
        grid_spec=pltpu.PrefetchScalarGridSpec(
            num_scalar_prefetch=0,
            grid=(N,),
            in_specs=[act_spec, act_spec, w_spec, b_spec, w_spec, b_spec],
            out_specs=act_spec,
        ),
        compiler_params=compiler_params,
    )(rgb, mask, w_rgb, b_rgb, w_mask, b_mask)
    return out.reshape(N, C, H, W)


# --------------------------------------------------------------------------
# Pure-JAX reference (f32) for validation.
# --------------------------------------------------------------------------
def _reference_se(f_rgb, f_mask, params):
    p_r = jnp.mean(f_rgb, axis=(2, 3), keepdims=True)    # (N, C, 1, 1)
    p_m = jnp.mean(f_mask, axis=(2, 3), keepdims=True)
    att_r = jax.nn.sigmoid(
        jnp.einsum("oc,ncij->noij", params["w_rgb"], p_r)
        + params["b_rgb"][None, :, None, None])
    att_m = jax.nn.sigmoid(
        jnp.einsum("oc,ncij->noij", params["w_mask"], p_m)
        + params["b_mask"][None, :, None, None])
    return f_rgb * att_r + f_mask * att_m


if __name__ == "__main__":
    key = jax.random.PRNGKey(0)
    kp, kr, km = jax.random.split(key, 3)

    N, C, H, W = 2, 128, 16, 16
    params = make_params(kp, C)
    f_rgb = jax.random.normal(kr, (N, C, H, W), dtype=jnp.float32)
    f_mask = jax.random.normal(km, (N, C, H, W), dtype=jnp.float32)

    # ---- 'se' fusion ----
    out_se = jax.block_until_ready(fusion_forward(f_rgb, f_mask, params, "se"))
    ref_se = _reference_se(f_rgb, f_mask, params)
    assert out_se.shape == (N, C, H, W), out_se.shape
    assert bool(jnp.all(jnp.isfinite(out_se)))
    assert bool(jnp.allclose(out_se, ref_se, rtol=2e-2, atol=2e-2)), float(
        jnp.max(jnp.abs(out_se - ref_se)))

    # ---- 'add' fusion ----
    out_add = jax.block_until_ready(fusion_forward(f_rgb, f_mask, None, "add"))
    assert out_add.shape == (N, C, H, W), out_add.shape
    assert bool(jnp.allclose(out_add, f_rgb + f_mask, rtol=1e-6, atol=1e-6))

    print("KERNEL_OK")
</pallas_src>

<mosaic_0001>
module attributes {stable_mosaic.version = 11 : i64} {
  func.func @_se_fusion_kernel(%arg0: i32, %arg1: memref<1x128x256xf32, #tpu.memory_space<vmem>>, %arg2: memref<1x128x256xf32, #tpu.memory_space<vmem>>, %arg3: memref<128x128xbf16, #tpu.memory_space<vmem>>, %arg4: memref<128x1xf32, #tpu.memory_space<vmem>>, %arg5: memref<128x128xbf16, #tpu.memory_space<vmem>>, %arg6: memref<128x1xf32, #tpu.memory_space<vmem>>, %arg7: memref<1x128x256xf32, #tpu.memory_space<vmem>>) attributes {dimension_semantics = [#tpu.dimension_semantics<parallel>], iteration_bounds = array<i64: 2>, scalar_prefetch = 0 : i64, scratch_operands = 0 : i64, tpu.core_type = #tpu.core_type<tc>, window_params = [{transform_indices = @transform_0, window_bounds = array<i64: 1, 128, 256>}, {transform_indices = @transform_1, window_bounds = array<i64: 1, 128, 256>}, {pipeline_mode = #tpu.pipeline_mode<synchronous>, transform_indices = @transform_2, window_bounds = array<i64: 128, 128>}, {pipeline_mode = #tpu.pipeline_mode<synchronous>, transform_indices = @transform_3, window_bounds = array<i64: 128, 1>}, {pipeline_mode = #tpu.pipeline_mode<synchronous>, transform_indices = @transform_4, window_bounds = array<i64: 128, 128>}, {pipeline_mode = #tpu.pipeline_mode<synchronous>, transform_indices = @transform_5, window_bounds = array<i64: 128, 1>}, {transform_indices = @transform_6, window_bounds = array<i64: 1, 128, 256>}]} {
    %c0 = arith.constant 0 : index
    %c0_0 = arith.constant 0 : index
    %c0_1 = arith.constant 0 : index
    %0 = vector.load %arg1[%c0, %c0_0, %c0_1] : memref<1x128x256xf32, #tpu.memory_space<vmem>>, vector<1x128x256xf32>
    %1 = vector.shape_cast %0 : vector<1x128x256xf32> to vector<128x256xf32>
    %c0_2 = arith.constant 0 : index
    %c0_3 = arith.constant 0 : index
    %c0_4 = arith.constant 0 : index
    %2 = vector.load %arg2[%c0_2, %c0_3, %c0_4] : memref<1x128x256xf32, #tpu.memory_space<vmem>>, vector<1x128x256xf32>
    %3 = vector.shape_cast %2 : vector<1x128x256xf32> to vector<128x256xf32>
    %cst = arith.constant dense<0.000000e+00> : vector<128xf32>
    %4 = vector.multi_reduction <add>, %1, %cst [1] : vector<128x256xf32> to vector<128xf32>
    %5 = vector.shape_cast %4 : vector<128xf32> to vector<128x1xf32>
    %cst_5 = arith.constant 2.560000e+02 : f32
    %6 = vector.broadcast %cst_5 : f32 to vector<128x1xf32>
    %7 = arith.divf %5, %6 : vector<128x1xf32>
    %cst_6 = arith.constant dense<0.000000e+00> : vector<128xf32>
    %8 = vector.multi_reduction <add>, %3, %cst_6 [1] : vector<128x256xf32> to vector<128xf32>
    %9 = vector.shape_cast %8 : vector<128xf32> to vector<128x1xf32>
    %cst_7 = arith.constant 2.560000e+02 : f32
    %10 = vector.broadcast %cst_7 : f32 to vector<128x1xf32>
    %11 = arith.divf %9, %10 : vector<128x1xf32>
    %c0_8 = arith.constant 0 : index
    %c0_9 = arith.constant 0 : index
    %12 = vector.load %arg3[%c0_8, %c0_9] : memref<128x128xbf16, #tpu.memory_space<vmem>>, vector<128x128xbf16>
    %13 = arith.truncf %7 : vector<128x1xf32> to vector<128x1xbf16>
    %cst_10 = arith.constant dense<0.000000e+00> : vector<128x1xf32>
    %14 = tpu.matmul %12, %13, %cst_10 {dimension_numbers = #tpu.dot_dimension_numbers<[1], [0], [0], [1], [0, 0, 1, 1], [], []>} : vector<128x128xbf16>, vector<128x1xbf16>, vector<128x1xf32> -> vector<128x1xf32>
    %c0_11 = arith.constant 0 : index
    %c0_12 = arith.constant 0 : index
    %15 = vector.load %arg4[%c0_11, %c0_12] : memref<128x1xf32, #tpu.memory_space<vmem>>, vector<128x1xf32>
    %16 = arith.addf %14, %15 : vector<128x1xf32>
    %17 = arith.negf %16 : vector<128x1xf32>
    %18 = math.exp %17 : vector<128x1xf32>
    %cst_13 = arith.constant 1.000000e+00 : f32
    %19 = vector.broadcast %cst_13 : f32 to vector<128x1xf32>
    %20 = arith.addf %19, %18 : vector<128x1xf32>
    %21 = arith.divf %19, %20 : vector<128x1xf32>
    %c0_14 = arith.constant 0 : index
    %c0_15 = arith.constant 0 : index
    %22 = vector.load %arg5[%c0_14, %c0_15] : memref<128x128xbf16, #tpu.memory_space<vmem>>, vector<128x128xbf16>
    %23 = arith.truncf %11 : vector<128x1xf32> to vector<128x1xbf16>
    %cst_16 = arith.constant dense<0.000000e+00> : vector<128x1xf32>
    %24 = tpu.matmul %22, %23, %cst_16 {dimension_numbers = #tpu.dot_dimension_numbers<[1], [0], [0], [1], [0, 0, 1, 1], [], []>} : vector<128x128xbf16>, vector<128x1xbf16>, vector<128x1xf32> -> vector<128x1xf32>
    %c0_17 = arith.constant 0 : index
    %c0_18 = arith.constant 0 : index
    %25 = vector.load %arg6[%c0_17, %c0_18] : memref<128x1xf32, #tpu.memory_space<vmem>>, vector<128x1xf32>
    %26 = arith.addf %24, %25 : vector<128x1xf32>
    %27 = arith.negf %26 : vector<128x1xf32>
    %28 = math.exp %27 : vector<128x1xf32>
    %cst_19 = arith.constant 1.000000e+00 : f32
    %29 = vector.broadcast %cst_19 : f32 to vector<128x1xf32>
    %30 = arith.addf %29, %28 : vector<128x1xf32>
    %31 = arith.divf %29, %30 : vector<128x1xf32>
    %32 = vector.broadcast %21 : vector<128x1xf32> to vector<128x256xf32>
    %33 = arith.mulf %1, %32 : vector<128x256xf32>
    %34 = vector.broadcast %31 : vector<128x1xf32> to vector<128x256xf32>
    %35 = arith.mulf %3, %34 : vector<128x256xf32>
    %36 = arith.addf %33, %35 : vector<128x256xf32>
    %c0_20 = arith.constant 0 : index
    %c0_21 = arith.constant 0 : index
    %c0_22 = arith.constant 0 : index
    %37 = vector.load %arg7[%c0_20, %c0_21, %c0_22] : memref<1x128x256xf32, #tpu.memory_space<vmem>>, vector<1x128x256xf32>
    %38 = vector.shape_cast %37 : vector<1x128x256xf32> to vector<128x256xf32>
    %39 = vector.shape_cast %36 : vector<128x256xf32> to vector<1x128x256xf32>
    tpu.vector_store %arg7[%c0_20, %c0_21, %c0_22], %39 {strides = array<i32>} : memref<1x128x256xf32, #tpu.memory_space<vmem>>, vector<1x128x256xf32>,
    return
  }
  func.func @transform_0(%arg0: i32) -> (i32, i32, i32) {
    %c0_i32 = arith.constant 0 : i32
    %c0_i32_0 = arith.constant 0 : i32
    %c0_i32_1 = arith.constant 0 : i32
    return %arg0, %c0_i32, %c0_i32_0 : i32, i32, i32
  }
  func.func @transform_1(%arg0: i32) -> (i32, i32, i32) {
    %c0_i32 = arith.constant 0 : i32
    %c0_i32_0 = arith.constant 0 : i32
    %c0_i32_1 = arith.constant 0 : i32
    return %arg0, %c0_i32, %c0_i32_0 : i32, i32, i32
  }
  func.func @transform_2(%arg0: i32) -> (i32, i32) {
    %c0_i32 = arith.constant 0 : i32
    %c0_i32_0 = arith.constant 0 : i32
    %c0_i32_1 = arith.constant 0 : i32
    return %c0_i32, %c0_i32_0 : i32, i32
  }
  func.func @transform_3(%arg0: i32) -> (i32, i32) {
    %c0_i32 = arith.constant 0 : i32
    %c0_i32_0 = arith.constant 0 : i32
    %c0_i32_1 = arith.constant 0 : i32
    return %c0_i32, %c0_i32_0 : i32, i32
  }
  func.func @transform_4(%arg0: i32) -> (i32, i32) {
    %c0_i32 = arith.constant 0 : i32
    %c0_i32_0 = arith.constant 0 : i32
    %c0_i32_1 = arith.constant 0 : i32
    return %c0_i32, %c0_i32_0 : i32, i32
  }
  func.func @transform_5(%arg0: i32) -> (i32, i32) {
    %c0_i32 = arith.constant 0 : i32
    %c0_i32_0 = arith.constant 0 : i32
    %c0_i32_1 = arith.constant 0 : i32
    return %c0_i32, %c0_i32_0 : i32, i32
  }
  func.func @transform_6(%arg0: i32) -> (i32, i32, i32) {
    %c0_i32 = arith.constant 0 : i32
    %c0_i32_0 = arith.constant 0 : i32
    %c0_i32_1 = arith.constant 0 : i32
    return %arg0, %c0_i32, %c0_i32_0 : i32, i32, i32
  }
}

</mosaic_0001>

<llo_original>
// kernel: tpu_custom_call.1
$region0: #{tpu_custom_call.1}
  #allocation0 [shape = 'u32[]', space=smem, size = 0x4, offset = 0x4, fixed_abs, tag = 'smem constant byte address 0x4 - core index']
  #allocation1 [shape = 'u32[72,128]{1,0:T(1,128)}', space=vmem, size = 0x9000, scoped, tag = 'internal scratch']
  %s0 = inlined_call_operand.hbm [shape: f32[2,128,256], index: 0, kind: input, shape index: {}]
  %s1 = inlined_call_operand.hbm [shape: f32[2,128,256], index: 1, kind: input, shape index: {}]
  %s2 = inlined_call_operand.vmem [shape: bf16[128,128], index: 2, kind: input, shape index: {}]
  %s3 = inlined_call_operand.vmem [shape: f32[128,1], index: 3, kind: input, shape index: {}]
  %s4 = inlined_call_operand.vmem [shape: bf16[128,128], index: 4, kind: input, shape index: {}]
  %s5 = inlined_call_operand.vmem [shape: f32[128,1], index: 5, kind: input, shape index: {}]
  %s6 = inlined_call_operand.hbm [shape: f32[2,128,256], index: 6, kind: output, shape index: {}]
  %s7 = sld [smem:[#allocation0]]
  $region65: #{tpu_custom_call.1} parent=0
    _
  %s9 = ssub.s32 1, %s7
  %s10 = scalar_select 0, %s9, %s7
  $region1: #{tpu_custom_call.1} parent=0
    #allocation2 [shape = 'u8[262144]{0}', space=vmem, size = 0x40000, scoped, tag = 'input window, operand 0']
    #allocation3 [shape = 's32[2]{0}', space=sflag, size = 0x8, scoped, tag = 'scoped memory for tpu_custom_call.1']
    #allocation4 [shape = 's32[2]{0}', space=sflag, size = 0x8, scoped, tag = 'scoped memory for tpu_custom_call.1']
    #allocation5 [shape = 'u8[262144]{0}', space=vmem, size = 0x40000, scoped, tag = 'input window, operand 1']
    #allocation6 [shape = 's32[2]{0}', space=sflag, size = 0x8, scoped, tag = 'scoped memory for tpu_custom_call.1']
    #allocation7 [shape = 'u8[262144]{0}', space=vmem, size = 0x40000, scoped, tag = 'output window, operand 0']
    %11 = vsyncpa [#allocation3], 0
    %s12 = scalar_lea.sflag [#allocation3], 1
    %13 = vsyncpa %s12, 0
    %14 = vsyncpa [#allocation6], 0
    %s15 = scalar_lea.sflag [#allocation6], 1
    %16 = vsyncpa %s15, 0
    %17 = vsyncpa [#allocation4], 0
    %s18 = scalar_lea.sflag [#allocation4], 1
    %19 = vsyncpa %s18, 0
    loop: start=0, step=1, limit=4
    $region2: #{tpu_custom_call.1} parent=1 // loop_pre_header
      _
    $region3: #{tpu_custom_call.1} parent=1 // loop_header
      %s21 = sphi 0, %s25
      %p22 = scmp.ge.s32.totalorder %s21, 4
      %s31 = sphi 0, %s33
      %s34 = sphi 0, %s31
      %s35 = sphi 0, %s34
      %s51 = sphi 0, %s35
      %s57 = sphi 0, %s59
      %s60 = sphi 0, %s57
      %s61 = sphi 0, %s60
      %s77 = sphi 0, %s61
      %s81 = sphi 0, %s81
      %s83 = sphi 0, %s81
      %s84 = sphi 0, %s83
      %s98 = sphi 0, %s84
      %s102 = sphi 0, %s102
      %s104 = sphi 0, %s102
      %s105 = sphi 0, %s104
      %s119 = sphi 0, %s105
      %s123 = sphi 0, %s123
      %s125 = sphi 0, %s123
      %s126 = sphi 0, %s125
      %s140 = sphi 0, %s126
      %s144 = sphi 0, %s144
      %s146 = sphi 0, %s144
      %s147 = sphi 0, %s146
      %s161 = sphi 0, %s147
      %s167 = sphi 0, %s169
      %s170 = sphi 0, %s167
      %s171 = sphi 0, %s170
      %s187 = sphi 0, %s171
    $region4: #{tpu_custom_call.1} parent=1 // loop_header_branch
      %24 = sbr.rel (%p22) target = $region8
    $region5: #{tpu_custom_call.1} parent=1 // loop_body
      %s26 = ssub.s32 %s21, 1
      %s27 = ssub.s32 %s21, 2
      %s28 = sadd.s32 %s21, 1
      %s29 = ssub.s32 %s21, %s28
      %p30 = scmp.eq.s32.totalorder %s29, 0
      %s32 = sadd.s32 %s31, 1
      %s33 = scalar_select %p30, %s31, %s32
      %p36 = pneg %p30
      %p37 = scmp.eq.s32.totalorder %s21, 1
      %p38 = por %p36, %p37
      %p39 = scmp.ne.s32.totalorder %s31, %s34
      %p40 = scmp.eq.s32.totalorder %s21, 0
      %p41 = por %p39, %p40
      %p42 = scmp.ne.s32.totalorder %s31, %s34
      %p43 = scmp.eq.s32.totalorder %s26, 1
      %p44 = por %p42, %p43
      %p45 = scmp.ne.s32.totalorder %s34, %s35
      %p46 = scmp.eq.s32.totalorder %s26, 0
      %p47 = por %p45, %p46
      %p48 = scmp.ne.s32.totalorder %s34, %s35
      %p49 = scmp.eq.s32.totalorder %s27, 1
      %p50 = por %p48, %p49
      %p52 = scmp.ne.s32.totalorder %s35, %s51
      %p53 = scmp.eq.s32.totalorder %s27, 0
      %p54 = por %p52, %p53
      %s55 = ssub.s32 %s21, %s28
      %p56 = scmp.eq.s32.totalorder %s55, 0
      %s58 = sadd.s32 %s57, 1
      %s59 = scalar_select %p56, %s57, %s58
      %p62 = pneg %p56
      %p63 = scmp.eq.s32.totalorder %s21, 1
      %p64 = por %p62, %p63
      %p65 = scmp.ne.s32.totalorder %s57, %s60
      %p66 = scmp.eq.s32.totalorder %s21, 0
      %p67 = por %p65, %p66
      %p68 = scmp.ne.s32.totalorder %s57, %s60
      %p69 = scmp.eq.s32.totalorder %s26, 1
      %p70 = por %p68, %p69
      %p71 = scmp.ne.s32.totalorder %s60, %s61
      %p72 = scmp.eq.s32.totalorder %s26, 0
      %p73 = por %p71, %p72
      %p74 = scmp.ne.s32.totalorder %s60, %s61
      %p75 = scmp.eq.s32.totalorder %s27, 1
      %p76 = por %p74, %p75
      %p78 = scmp.ne.s32.totalorder %s61, %s77
      %p79 = scmp.eq.s32.totalorder %s27, 0
      %p80 = por %p78, %p79
      %s82 = sadd.s32 %s81, 1
      %p85 = scmp.eq.s32.totalorder %s21, 1
      %p86 = scmp.ne.s32.totalorder %s81, %s83
      %p87 = scmp.eq.s32.totalorder %s21, 0
      %p88 = por %p86, %p87
      %p89 = scmp.ne.s32.totalorder %s81, %s83
      %p90 = scmp.eq.s32.totalorder %s26, 1
      %p91 = por %p89, %p90
      %p92 = scmp.ne.s32.totalorder %s83, %s84
      %p93 = scmp.eq.s32.totalorder %s26, 0
      %p94 = por %p92, %p93
      %p95 = scmp.ne.s32.totalorder %s83, %s84
      %p96 = scmp.eq.s32.totalorder %s27, 1
      %p97 = por %p95, %p96
      %p99 = scmp.ne.s32.totalorder %s84, %s98
      %p100 = scmp.eq.s32.totalorder %s27, 0
      %p101 = por %p99, %p100
      %s103 = sadd.s32 %s102, 1
      %p106 = scmp.eq.s32.totalorder %s21, 1
      %p107 = scmp.ne.s32.totalorder %s102, %s104
      %p108 = scmp.eq.s32.totalorder %s21, 0
      %p109 = por %p107, %p108
      %p110 = scmp.ne.s32.totalorder %s102, %s104
      %p111 = scmp.eq.s32.totalorder %s26, 1
      %p112 = por %p110, %p111
      %p113 = scmp.ne.s32.totalorder %s104, %s105
      %p114 = scmp.eq.s32.totalorder %s26, 0
      %p115 = por %p113, %p114
      %p116 = scmp.ne.s32.totalorder %s104, %s105
      %p117 = scmp.eq.s32.totalorder %s27, 1
      %p118 = por %p116, %p117
      %p120 = scmp.ne.s32.totalorder %s105, %s119
      %p121 = scmp.eq.s32.totalorder %s27, 0
      %p122 = por %p120, %p121
      %s124 = sadd.s32 %s123, 1
      %p127 = scmp.eq.s32.totalorder %s21, 1
      %p128 = scmp.ne.s32.totalorder %s123, %s125
      %p129 = scmp.eq.s32.totalorder %s21, 0
      %p130 = por %p128, %p129
      %p131 = scmp.ne.s32.totalorder %s123, %s125
      %p132 = scmp.eq.s32.totalorder %s26, 1
      %p133 = por %p131, %p132
      %p134 = scmp.ne.s32.totalorder %s125, %s126
      %p135 = scmp.eq.s32.totalorder %s26, 0
      %p136 = por %p134, %p135
      %p137 = scmp.ne.s32.totalorder %s125, %s126
      %p138 = scmp.eq.s32.totalorder %s27, 1
      %p139 = por %p137, %p138
      %p141 = scmp.ne.s32.totalorder %s126, %s140
      %p142 = scmp.eq.s32.totalorder %s27, 0
      %p143 = por %p141, %p142
      %s145 = sadd.s32 %s144, 1
      %p148 = scmp.eq.s32.totalorder %s21, 1
      %p149 = scmp.ne.s32.totalorder %s144, %s146
      %p150 = scmp.eq.s32.totalorder %s21, 0
      %p151 = por %p149, %p150
      %p152 = scmp.ne.s32.totalorder %s144, %s146
      %p153 = scmp.eq.s32.totalorder %s26, 1
      %p154 = por %p152, %p153
      %p155 = scmp.ne.s32.totalorder %s146, %s147
      %p156 = scmp.eq.s32.totalorder %s26, 0
      %p157 = por %p155, %p156
      %p158 = scmp.ne.s32.totalorder %s146, %s147
      %p159 = scmp.eq.s32.totalorder %s27, 1
      %p160 = por %p158, %p159
      %p162 = scmp.ne.s32.totalorder %s147, %s161
      %p163 = scmp.eq.s32.totalorder %s27, 0
      %p164 = por %p162, %p163
      %s165 = ssub.s32 %s21, %s28
      %p166 = scmp.eq.s32.totalorder %s165, 0
      %s168 = sadd.s32 %s167, 1
      %s169 = scalar_select %p166, %s167, %s168
      %p172 = pneg %p166
      %p173 = scmp.eq.s32.totalorder %s21, 1
      %p174 = por %p172, %p173
      %p175 = scmp.ne.s32.totalorder %s167, %s170
      %p176 = scmp.eq.s32.totalorder %s21, 0
      %p177 = por %p175, %p176
      %p178 = scmp.ne.s32.totalorder %s167, %s170
      %p179 = scmp.eq.s32.totalorder %s26, 1
      %p180 = por %p178, %p179
      %p181 = scmp.ne.s32.totalorder %s170, %s171
      %p182 = scmp.eq.s32.totalorder %s26, 0
      %p183 = por %p181, %p182
      %p184 = scmp.ne.s32.totalorder %s170, %s171
      %p185 = scmp.eq.s32.totalorder %s27, 1
      %p186 = por %p184, %p185
      %p188 = scmp.ne.s32.totalorder %s171, %s187
      %p189 = scmp.eq.s32.totalorder %s27, 0
      %p190 = por %p188, %p189
      %p191 = scmp.le.s32.totalorder 1, %s21
      %p192 = scmp.lt.s32.totalorder %s21, 3
      %p193 = pnand %p191, %p192
      %p194 = pneg %p193
      // Predicated region
      $region9: #{tpu_custom_call.1} parent=5 // pred_check
        _
      $region10: #{tpu_custom_call.1} parent=5 // pred_check_branch
        %196 = sbr.rel (%p193) target = $region12
      $region11: #{tpu_custom_call.1} parent=5 // pred_region
        %s197 = ssub.s32 %s21, 1
        // Predicated region
        $region13: #{tpu_custom_call.1} parent=11 // pred_check
          %p198 = pneg %p94
        $region14: #{tpu_custom_call.1} parent=11 // pred_check_branch
          %200 = sbr.rel (%p198) target = $region16
        $region15: #{tpu_custom_call.1} parent=11 // pred_region
          _
        $region16: #{tpu_custom_call.1} parent=11 // pred_fallthru
          _
        // Predicated region
        $region17: #{tpu_custom_call.1} parent=11 // pred_check
          %p201 = pneg %p115
        $region18: #{tpu_custom_call.1} parent=11 // pred_check_branch
          %203 = sbr.rel (%p201) target = $region20
        $region19: #{tpu_custom_call.1} parent=11 // pred_region
          _
        $region20: #{tpu_custom_call.1} parent=11 // pred_fallthru
          _
        // Predicated region
        $region21: #{tpu_custom_call.1} parent=11 // pred_check
          %p204 = pneg %p136
        $region22: #{tpu_custom_call.1} parent=11 // pred_check_branch
          %206 = sbr.rel (%p204) target = $region24
        $region23: #{tpu_custom_call.1} parent=11 // pred_region
          _
        $region24: #{tpu_custom_call.1} parent=11 // pred_fallthru
          _
        // Predicated region
        $region25: #{tpu_custom_call.1} parent=11 // pred_check
          %p207 = pneg %p157
        $region26: #{tpu_custom_call.1} parent=11 // pred_check_branch
          %209 = sbr.rel (%p207) target = $region28
        $region27: #{tpu_custom_call.1} parent=11 // pred_region
          _
        $region28: #{tpu_custom_call.1} parent=11 // pred_fallthru
          _
      $region12: #{tpu_custom_call.1} parent=5 // pred_fallthru
        _
      %p210 = scmp.lt.s32.totalorder %s21, 2
      // Predicated region
      $region29: #{tpu_custom_call.1} parent=5 // pred_check
        %p211 = pneg %p210
      $region30: #{tpu_custom_call.1} parent=5 // pred_check_branch
        %213 = sbr.rel (%p211) target = $region32
      $region31: #{tpu_custom_call.1} parent=5 // pred_region
        // Predicated region
        $region33: #{tpu_custom_call.1} parent=31 // pred_check
          %p214 = pneg %p41
        $region34: #{tpu_custom_call.1} parent=31 // pred_check_branch
          %216 = sbr.rel (%p214) target = $region36
        $region35: #{tpu_custom_call.1} parent=31 // pred_region
          %s217 = sand.u32 %s31, 1
          %s218 = scalar_lea.sflag [#allocation3], %s217
          %s219 = sand.u32 %s31, 1
          %s220 = smul.addr %s219, 256
          %s221 = scalar_lea.vmem [#allocation2], %s220
          %223 = vsyncadd %s218, 0
          %s224 = smul.addr %s21, 32
          %s225 = smul.addr %s224, 8
          %s226 = scalar_lea.hbm %s0, %s225
          %s227 = sshll.u32 %s226, 4
          %s228 = int_to_ptr.hbm [resolvable:$true] %s227
          %s229 = sshll.u32 %s221, 4
          %s230 = int_to_ptr.vmem [resolvable:$true] %s229
          %235 = dma.hbm_to_vmem [thread:$0]  %s228, 4096, %s230, %s218, 256, 256, 16
        $region36: #{tpu_custom_call.1} parent=31 // pred_fallthru
          _
        // Predicated region
        $region37: #{tpu_custom_call.1} parent=31 // pred_check
          %p236 = pneg %p67
        $region38: #{tpu_custom_call.1} parent=31 // pred_check_branch
          %238 = sbr.rel (%p236) target = $region40
        $region39: #{tpu_custom_call.1} parent=31 // pred_region
          %s239 = sand.u32 %s57, 1
          %s240 = scalar_lea.sflag [#allocation6], %s239
          %s241 = sand.u32 %s57, 1
          %s242 = smul.addr %s241, 256
          %s243 = scalar_lea.vmem [#allocation5], %s242
          %245 = vsyncadd %s240, 0
          %s246 = smul.addr %s21, 32
          %s247 = smul.addr %s246, 8
          %s248 = scalar_lea.hbm %s1, %s247
          %s249 = sshll.u32 %s248, 4
          %s250 = int_to_ptr.hbm [resolvable:$true] %s249
          %s251 = sshll.u32 %s243, 4
          %s252 = int_to_ptr.vmem [resolvable:$true] %s251
          %257 = dma.hbm_to_vmem [thread:$0]  %s250, 4096, %s252, %s240, 256, 256, 16
        $region40: #{tpu_custom_call.1} parent=31 // pred_fallthru
          _
      $region32: #{tpu_custom_call.1} parent=5 // pred_fallthru
        _
      %p258 = scmp.le.s32.totalorder 1, %s21
      %p259 = scmp.lt.s32.totalorder %s21, 3
      %p260 = pnand %p258, %p259
      %p261 = pneg %p260
      // Predicated region
      $region41: #{tpu_custom_call.1} parent=5 // pred_check
        _
      $region42: #{tpu_custom_call.1} parent=5 // pred_check_branch
        %263 = sbr.rel (%p260) target = $region44
      $region43: #{tpu_custom_call.1} parent=5 // pred_region
        %s264 = ssub.s32 %s21, 1
        %s265 = sand.u32 %s34, 1
        %s266 = scalar_lea.sflag [#allocation3], %s265
        %s267 = sand.u32 %s34, 1
        %s268 = smul.addr %s267, 256
        %s269 = scalar_lea.vmem [#allocation2], %s268
        // Predicated region
        $region45: #{tpu_custom_call.1} parent=43 // pred_check
          %p270 = pneg %p47
        $region46: #{tpu_custom_call.1} parent=43 // pred_check_branch
          %272 = sbr.rel (%p270) target = $region48
        $region47: #{tpu_custom_call.1} parent=43 // pred_region
          %274 = dma.done %s266, 4096
        $region48: #{tpu_custom_call.1} parent=43 // pred_fallthru
          _
        %s275 = sand.u32 %s60, 1
        %s276 = scalar_lea.sflag [#allocation6], %s275
        %s277 = sand.u32 %s60, 1
        %s278 = smul.addr %s277, 256
        %s279 = scalar_lea.vmem [#allocation5], %s278
        // Predicated region
        $region49: #{tpu_custom_call.1} parent=43 // pred_check
          %p280 = pneg %p73
        $region50: #{tpu_custom_call.1} parent=43 // pred_check_branch
          %282 = sbr.rel (%p280) target = $region52
        $region51: #{tpu_custom_call.1} parent=43 // pred_region
          %284 = dma.done %s276, 4096
        $region52: #{tpu_custom_call.1} parent=43 // pred_fallthru
          _
        %s285 = sand.u32 %s34, 1
        %s286 = scalar_lea.sflag [#allocation3], %s285
        %s287 = sand.u32 %s34, 1
        %s288 = smul.addr %s287, 256
        %s289 = scalar_lea.vmem [#allocation2], %s288
        %p290 = pneg %p47
        %p291 = pneg %p44
        %s292 = sand.u32 %s60, 1
        %s293 = scalar_lea.sflag [#allocation6], %s292
        %s294 = sand.u32 %s60, 1
        %s295 = smul.addr %s294, 256
        %s296 = scalar_lea.vmem [#allocation5], %s295
        %p297 = pneg %p73
        %p298 = pneg %p70
        %p299 = pneg %p94
        %p300 = pneg %p91
        %p301 = pneg %p115
        %p302 = pneg %p112
        %p303 = pneg %p136
        %p304 = pneg %p133
        %p305 = pneg %p157
        %p306 = pneg %p154
        %p307 = pneg %p183
        %p308 = pneg %p180
        %s309 = sand.u32 %s170, 1
        %s310 = scalar_lea.sflag [#allocation4], %s309
        %s311 = sand.u32 %s170, 1
        %s312 = smul.addr %s311, 256
        %s313 = scalar_lea.vmem [#allocation7], %s312
        %v314 = vld [vmem:[%s269] sm:$0xff]
        %v315 = vld [vmem:[%s269 + $0x8] sm:$0xff]
        %v316 = vld [vmem:[%s269 + $0x10] sm:$0xff]
        %v317 = vld [vmem:[%s269 + $0x18] sm:$0xff]
        %v318 = vld [vmem:[%s269 + $0x20] sm:$0xff]
        %v319 = vld [vmem:[%s269 + $0x28] sm:$0xff]
        %v320 = vld [vmem:[%s269 + $0x30] sm:$0xff]
        %v321 = vld [vmem:[%s269 + $0x38] sm:$0xff]
        %v322 = vld [vmem:[%s269 + $0x40] sm:$0xff]
        %v323 = vld [vmem:[%s269 + $0x48] sm:$0xff]
        %v324 = vld [vmem:[%s269 + $0x50] sm:$0xff]
        %v325 = vld [vmem:[%s269 + $0x58] sm:$0xff]
        %v326 = vld [vmem:[%s269 + $0x60] sm:$0xff]
        %v327 = vld [vmem:[%s269 + $0x68] sm:$0xff]
        %v328 = vld [vmem:[%s269 + $0x70] sm:$0xff]
        %v329 = vld [vmem:[%s269 + $0x78] sm:$0xff]
        %v330 = vld [vmem:[%s269 + $0x80] sm:$0xff]
        %v331 = vld [vmem:[%s269 + $0x88] sm:$0xff]
        %v332 = vld [vmem:[%s269 + $0x90] sm:$0xff]
        %v333 = vld [vmem:[%s269 + $0x98] sm:$0xff]
        %v334 = vld [vmem:[%s269 + $0xa0] sm:$0xff]
        %v335 = vld [vmem:[%s269 + $0xa8] sm:$0xff]
        %v336 = vld [vmem:[%s269 + $0xb0] sm:$0xff]
        %v337 = vld [vmem:[%s269 + $0xb8] sm:$0xff]
        %v338 = vld [vmem:[%s269 + $0xc0] sm:$0xff]
        %v339 = vld [vmem:[%s269 + $0xc8] sm:$0xff]
        %v340 = vld [vmem:[%s269 + $0xd0] sm:$0xff]
        %v341 = vld [vmem:[%s269 + $0xd8] sm:$0xff]
        %v342 = vld [vmem:[%s269 + $0xe0] sm:$0xff]
        %v343 = vld [vmem:[%s269 + $0xe8] sm:$0xff]
        %v344 = vld [vmem:[%s269 + $0xf0] sm:$0xff]
        %v345 = vld [vmem:[%s269 + $0xf8] sm:$0xff]
        %v346 = vld [vmem:[%s279] sm:$0xff]
        %v347 = vld [vmem:[%s279 + $0x8] sm:$0xff]
        %v348 = vld [vmem:[%s279 + $0x10] sm:$0xff]
        %v349 = vld [vmem:[%s279 + $0x18] sm:$0xff]
        %v350 = vld [vmem:[%s279 + $0x20] sm:$0xff]
        %v351 = vld [vmem:[%s279 + $0x28] sm:$0xff]
        %v352 = vld [vmem:[%s279 + $0x30] sm:$0xff]
        %v353 = vld [vmem:[%s279 + $0x38] sm:$0xff]
        %v354 = vld [vmem:[%s279 + $0x40] sm:$0xff]
        %v355 = vld [vmem:[%s279 + $0x48] sm:$0xff]
        %v356 = vld [vmem:[%s279 + $0x50] sm:$0xff]
        %v357 = vld [vmem:[%s279 + $0x58] sm:$0xff]
        %v358 = vld [vmem:[%s279 + $0x60] sm:$0xff]
        %v359 = vld [vmem:[%s279 + $0x68] sm:$0xff]
        %v360 = vld [vmem:[%s279 + $0x70] sm:$0xff]
        %v361 = vld [vmem:[%s279 + $0x78] sm:$0xff]
        %v362 = vld [vmem:[%s279 + $0x80] sm:$0xff]
        %v363 = vld [vmem:[%s279 + $0x88] sm:$0xff]
        %v364 = vld [vmem:[%s279 + $0x90] sm:$0xff]
        %v365 = vld [vmem:[%s279 + $0x98] sm:$0xff]
        %v366 = vld [vmem:[%s279 + $0xa0] sm:$0xff]
        %v367 = vld [vmem:[%s279 + $0xa8] sm:$0xff]
        %v368 = vld [vmem:[%s279 + $0xb0] sm:$0xff]
        %v369 = vld [vmem:[%s279 + $0xb8] sm:$0xff]
        %v370 = vld [vmem:[%s279 + $0xc0] sm:$0xff]
        %v371 = vld [vmem:[%s279 + $0xc8] sm:$0xff]
        %v372 = vld [vmem:[%s279 + $0xd0] sm:$0xff]
        %v373 = vld [vmem:[%s279 + $0xd8] sm:$0xff]
        %v374 = vld [vmem:[%s279 + $0xe0] sm:$0xff]
        %v375 = vld [vmem:[%s279 + $0xe8] sm:$0xff]
        %v376 = vld [vmem:[%s279 + $0xf0] sm:$0xff]
        %v377 = vld [vmem:[%s279 + $0xf8] sm:$0xff]
        %v378 = vadd.f32 %v314, %v315
        %379 = vadd.xlane.f32.xlu0 %v378
        %v380 = vpop.xlane.xlu0 %379
        %v381 = vadd.f32 %v316, %v317
        %382 = vadd.xlane.f32.xlu0 %v381
        %v383 = vpop.xlane.xlu0 %382
        %v384 = vadd.f32 %v318, %v319
        %385 = vadd.xlane.f32.xlu0 %v384
        %v386 = vpop.xlane.xlu0 %385
        %v387 = vadd.f32 %v320, %v321
        %388 = vadd.xlane.f32.xlu0 %v387
        %v389 = vpop.xlane.xlu0 %388
        %v390 = vadd.f32 %v322, %v323
        %391 = vadd.xlane.f32.xlu0 %v390
        %v392 = vpop.xlane.xlu0 %391
        %v393 = vadd.f32 %v324, %v325
        %394 = vadd.xlane.f32.xlu0 %v393
        %v395 = vpop.xlane.xlu0 %394
        %v396 = vadd.f32 %v326, %v327
        %397 = vadd.xlane.f32.xlu0 %v396
        %v398 = vpop.xlane.xlu0 %397
        %v399 = vadd.f32 %v328, %v329
        %400 = vadd.xlane.f32.xlu0 %v399
        %v401 = vpop.xlane.xlu0 %400
        %v402 = vadd.f32 %v330, %v331
        %403 = vadd.xlane.f32.xlu0 %v402
        %v404 = vpop.xlane.xlu0 %403
        %v405 = vadd.f32 %v332, %v333
        %406 = vadd.xlane.f32.xlu0 %v405
        %v407 = vpop.xlane.xlu0 %406
        %v408 = vadd.f32 %v334, %v335
        %409 = vadd.xlane.f32.xlu0 %v408
        %v410 = vpop.xlane.xlu0 %409
        %v411 = vadd.f32 %v336, %v337
        %412 = vadd.xlane.f32.xlu0 %v411
        %v413 = vpop.xlane.xlu0 %412
        %v414 = vadd.f32 %v338, %v339
        %415 = vadd.xlane.f32.xlu0 %v414
        %v416 = vpop.xlane.xlu0 %415
        %v417 = vadd.f32 %v340, %v341
        %418 = vadd.xlane.f32.xlu0 %v417
        %v419 = vpop.xlane.xlu0 %418
        %v420 = vadd.f32 %v342, %v343
        %421 = vadd.xlane.f32.xlu0 %v420
        %v422 = vpop.xlane.xlu0 %421
        %v423 = vadd.f32 %v344, %v345
        %424 = vadd.xlane.f32.xlu0 %v423
        %v425 = vpop.xlane.xlu0 %424
        %v426 = vrcp.pop 256.0
        %v427 = vmul.f32 256.0, %v426
        %v428 = vsub.f32 1.0, %v427
        %v429 = vmul.f32 %v426, %v428
        %v430 = vadd.f32 %v426, %v429
        %vm431 = vweird.f32 %v426
        %v432 = vsel %vm431, %v426, %v430
        %v433 = vmul.f32 %v380, %v432
        %v434 = vmul.f32 %v383, %v432
        %v435 = vmul.f32 %v386, %v432
        %v436 = vmul.f32 %v389, %v432
        %v437 = vmul.f32 %v392, %v432
        %v438 = vmul.f32 %v395, %v432
        %v439 = vmul.f32 %v398, %v432
        %v440 = vmul.f32 %v401, %v432
        %v441 = vmul.f32 %v404, %v432
        %v442 = vmul.f32 %v407, %v432
        %v443 = vmul.f32 %v410, %v432
        %v444 = vmul.f32 %v413, %v432
        %v445 = vmul.f32 %v416, %v432
        %v446 = vmul.f32 %v419, %v432
        %v447 = vmul.f32 %v422, %v432
        %v448 = vmul.f32 %v425, %v432
        %v449 = vadd.f32 %v346, %v347
        %450 = vadd.xlane.f32.xlu0 %v449
        %v451 = vpop.xlane.xlu0 %450
        %v452 = vadd.f32 %v348, %v349
        %453 = vadd.xlane.f32.xlu0 %v452
        %v454 = vpop.xlane.xlu0 %453
        %v455 = vadd.f32 %v350, %v351
        %456 = vadd.xlane.f32.xlu0 %v455
        %v457 = vpop.xlane.xlu0 %456
        %v458 = vadd.f32 %v352, %v353
        %459 = vadd.xlane.f32.xlu0 %v458
        %v460 = vpop.xlane.xlu0 %459
        %v461 = vadd.f32 %v354, %v355
        %462 = vadd.xlane.f32.xlu0 %v461
        %v463 = vpop.xlane.xlu0 %462
        %v464 = vadd.f32 %v356, %v357
        %465 = vadd.xlane.f32.xlu0 %v464
        %v466 = vpop.xlane.xlu0 %465
        %v467 = vadd.f32 %v358, %v359
        %468 = vadd.xlane.f32.xlu0 %v467
        %v469 = vpop.xlane.xlu0 %468
        %v470 = vadd.f32 %v360, %v361
        %471 = vadd.xlane.f32.xlu0 %v470
        %v472 = vpop.xlane.xlu0 %471
        %v473 = vadd.f32 %v362, %v363
        %474 = vadd.xlane.f32.xlu0 %v473
        %v475 = vpop.xlane.xlu0 %474
        %v476 = vadd.f32 %v364, %v365
        %477 = vadd.xlane.f32.xlu0 %v476
        %v478 = vpop.xlane.xlu0 %477
        %v479 = vadd.f32 %v366, %v367
        %480 = vadd.xlane.f32.xlu0 %v479
        %v481 = vpop.xlane.xlu0 %480
        %v482 = vadd.f32 %v368, %v369
        %483 = vadd.xlane.f32.xlu0 %v482
        %v484 = vpop.xlane.xlu0 %483
        %v485 = vadd.f32 %v370, %v371
        %486 = vadd.xlane.f32.xlu0 %v485
        %v487 = vpop.xlane.xlu0 %486
        %v488 = vadd.f32 %v372, %v373
        %489 = vadd.xlane.f32.xlu0 %v488
        %v490 = vpop.xlane.xlu0 %489
        %v491 = vadd.f32 %v374, %v375
        %492 = vadd.xlane.f32.xlu0 %v491
        %v493 = vpop.xlane.xlu0 %492
        %v494 = vadd.f32 %v376, %v377
        %495 = vadd.xlane.f32.xlu0 %v494
        %v496 = vpop.xlane.xlu0 %495
        %v497 = vmul.f32 %v451, %v432
        %v498 = vmul.f32 %v454, %v432
        %v499 = vmul.f32 %v457, %v432
        %v500 = vmul.f32 %v460, %v432
        %v501 = vmul.f32 %v463, %v432
        %v502 = vmul.f32 %v466, %v432
        %v503 = vmul.f32 %v469, %v432
        %v504 = vmul.f32 %v472, %v432
        %v505 = vmul.f32 %v475, %v432
        %v506 = vmul.f32 %v478, %v432
        %v507 = vmul.f32 %v481, %v432
        %v508 = vmul.f32 %v484, %v432
        %v509 = vmul.f32 %v487, %v432
        %v510 = vmul.f32 %v490, %v432
        %v511 = vmul.f32 %v493, %v432
        %v512 = vmul.f32 %v496, %v432
        %v513 = vld [vmem:[%s2] sm:$0xf]
        %v514 = vld [vmem:[%s2 + $0x4] sm:$0xf]
        %v515 = vld [vmem:[%s2 + $0x8] sm:$0xf]
        %v516 = vld [vmem:[%s2 + $0xc] sm:$0xf]
        %v517 = vld [vmem:[%s2 + $0x10] sm:$0xf]
        %v518 = vld [vmem:[%s2 + $0x14] sm:$0xf]
        %v519 = vld [vmem:[%s2 + $0x18] sm:$0xf]
        %v520 = vld [vmem:[%s2 + $0x1c] sm:$0xf]
        %v521 = vld [vmem:[%s2 + $0x20] sm:$0xf]
        %v522 = vld [vmem:[%s2 + $0x24] sm:$0xf]
        %v523 = vld [vmem:[%s2 + $0x28] sm:$0xf]
        %v524 = vld [vmem:[%s2 + $0x2c] sm:$0xf]
        %v525 = vld [vmem:[%s2 + $0x30] sm:$0xf]
        %v526 = vld [vmem:[%s2 + $0x34] sm:$0xf]
        %v527 = vld [vmem:[%s2 + $0x38] sm:$0xf]
        %v528 = vld [vmem:[%s2 + $0x3c] sm:$0xf]
        %v529 = vpack.c.bf16 %v434, %v433
        %v530 = vpack.c.bf16 %v436, %v435
        %v531 = vpack.c.bf16 %v438, %v437
        %v532 = vpack.c.bf16 %v440, %v439
        %v533 = vpack.c.bf16 %v442, %v441
        %v534 = vpack.c.bf16 %v444, %v443
        %v535 = vpack.c.bf16 %v446, %v445
        %v536 = vpack.c.bf16 %v448, %v447
        %v537 = vld [vmem:[%s3] sm:$0xff]
        %v538 = vld [vmem:[%s3 + $0x8] sm:$0xff]
        %v539 = vld [vmem:[%s3 + $0x10] sm:$0xff]
        %v540 = vld [vmem:[%s3 + $0x18] sm:$0xff]
        %v541 = vld [vmem:[%s3 + $0x20] sm:$0xff]
        %v542 = vld [vmem:[%s3 + $0x28] sm:$0xff]
        %v543 = vld [vmem:[%s3 + $0x30] sm:$0xff]
        %v544 = vld [vmem:[%s3 + $0x38] sm:$0xff]
        %v545 = vld [vmem:[%s3 + $0x40] sm:$0xff]
        %v546 = vld [vmem:[%s3 + $0x48] sm:$0xff]
        %v547 = vld [vmem:[%s3 + $0x50] sm:$0xff]
        %v548 = vld [vmem:[%s3 + $0x58] sm:$0xff]
        %v549 = vld [vmem:[%s3 + $0x60] sm:$0xff]
        %v550 = vld [vmem:[%s3 + $0x68] sm:$0xff]
        %v551 = vld [vmem:[%s3 + $0x70] sm:$0xff]
        %v552 = vld [vmem:[%s3 + $0x78] sm:$0xff]
        %v569 = vunpack.c.l.b16 %v513
        %v570 = vunpack.c.l.b16 %v514
        %v571 = vunpack.c.l.b16 %v515
        %v572 = vunpack.c.l.b16 %v516
        %v573 = vunpack.c.l.b16 %v517
        %v574 = vunpack.c.l.b16 %v518
        %v575 = vunpack.c.l.b16 %v519
        %v576 = vunpack.c.l.b16 %v520
        %v577 = vunpack.c.l.b16 %v521
        %v578 = vunpack.c.l.b16 %v522
        %v579 = vunpack.c.l.b16 %v523
        %v580 = vunpack.c.l.b16 %v524
        %v581 = vunpack.c.l.b16 %v525
        %v582 = vunpack.c.l.b16 %v526
        %v583 = vunpack.c.l.b16 %v527
        %v584 = vunpack.c.l.b16 %v528
        %v585 = vpack.c.b16 %v570, %v569
        %v586 = vpack.c.b16 %v572, %v571
        %v587 = vpack.c.b16 %v574, %v573
        %v588 = vpack.c.b16 %v576, %v575
        %v589 = vpack.c.b16 %v578, %v577
        %v590 = vpack.c.b16 %v580, %v579
        %v591 = vpack.c.b16 %v582, %v581
        %v592 = vpack.c.b16 %v584, %v583
        %601 = vmatpush.bf16.msra.mxu0 %v536
        %602 = vmatpush.bf16.msra.mxu0 %v535
        %603 = vmatpush.bf16.msra.mxu0 %v534
        %604 = vmatpush.bf16.msra.mxu0 %v533
        %605 = vmatpush.bf16.msra.mxu0 %v532
        %606 = vmatpush.bf16.msra.mxu0 %v531
        %607 = vmatpush.bf16.msra.mxu0 %v530
        %608 = vmatpush.bf16.msra.mxu0 %v529
        %609 = vmatmul.bf16.gmra.mxu0 %v585
        %v610 = vpop.f32.mrf.mxu0
        %v611 = vadd.f32 %v537, %v610
        %v612 = vpop.f32.mrf.mxu0
        %v613 = vadd.f32 %v538, %v612
        %614 = vmatmul.bf16.gmra.mxu0 %v586
        %v615 = vpop.f32.mrf.mxu0
        %v616 = vadd.f32 %v539, %v615
        %v617 = vpop.f32.mrf.mxu0
        %v618 = vadd.f32 %v540, %v617
        %619 = vmatmul.bf16.gmra.mxu0 %v587
        %v620 = vpop.f32.mrf.mxu0
        %v621 = vadd.f32 %v541, %v620
        %v622 = vpop.f32.mrf.mxu0
        %v623 = vadd.f32 %v542, %v622
        %624 = vmatmul.bf16.gmra.mxu0 %v588
        %v625 = vpop.f32.mrf.mxu0
        %v626 = vadd.f32 %v543, %v625
        %v627 = vpop.f32.mrf.mxu0
        %v628 = vadd.f32 %v544, %v627
        %629 = vmatmul.bf16.gmra.mxu0 %v589
        %v630 = vpop.f32.mrf.mxu0
        %v631 = vadd.f32 %v545, %v630
        %v632 = vpop.f32.mrf.mxu0
        %v633 = vadd.f32 %v546, %v632
        %634 = vmatmul.bf16.gmra.mxu0 %v590
        %v635 = vpop.f32.mrf.mxu0
        %v636 = vadd.f32 %v547, %v635
        %v637 = vpop.f32.mrf.mxu0
        %v638 = vadd.f32 %v548, %v637
        %639 = vmatmul.bf16.gmra.mxu0 %v591
        %v640 = vpop.f32.mrf.mxu0
        %v641 = vadd.f32 %v549, %v640
        %v642 = vpop.f32.mrf.mxu0
        %v643 = vadd.f32 %v550, %v642
        %644 = vmatmul.bf16.gmra.mxu0 %v592
        %v645 = vpop.f32.mrf.mxu0
        %v646 = vadd.f32 %v551, %v645
        %v647 = vpop.f32.mrf.mxu0
        %v648 = vadd.f32 %v552, %v647
        %649 = vdwg.mxu0
        %v650 = vxor.u32 %v611, 2147483648
        %v651 = vxor.u32 %v613, 2147483648
        %v652 = vxor.u32 %v616, 2147483648
        %v653 = vxor.u32 %v618, 2147483648
        %v654 = vxor.u32 %v621, 2147483648
        %v655 = vxor.u32 %v623, 2147483648
        %v656 = vxor.u32 %v626, 2147483648
        %v657 = vxor.u32 %v628, 2147483648
        %v658 = vxor.u32 %v631, 2147483648
        %v659 = vxor.u32 %v633, 2147483648
        %v660 = vxor.u32 %v636, 2147483648
        %v661 = vxor.u32 %v638, 2147483648
        %v662 = vxor.u32 %v641, 2147483648
        %v663 = vxor.u32 %v643, 2147483648
        %v664 = vxor.u32 %v646, 2147483648
        %v665 = vxor.u32 %v648, 2147483648
        %v666 = vmul.f32 %v650, 1.442695
        %v667 = vpow.pop %v666
        %v668 = vmul.f32 %v651, 1.442695
        %v669 = vpow.pop %v668
        %v670 = vmul.f32 %v652, 1.442695
        %v671 = vpow.pop %v670
        %v672 = vmul.f32 %v653, 1.442695
        %v673 = vpow.pop %v672
        %v674 = vmul.f32 %v654, 1.442695
        %v675 = vpow.pop %v674
        %v676 = vmul.f32 %v655, 1.442695
        %v677 = vpow.pop %v676
        %v678 = vmul.f32 %v656, 1.442695
        %v679 = vpow.pop %v678
        %v680 = vmul.f32 %v657, 1.442695
        %v681 = vpow.pop %v680
        %v682 = vmul.f32 %v658, 1.442695
        %v683 = vpow.pop %v682
        %v684 = vmul.f32 %v659, 1.442695
        %v685 = vpow.pop %v684
        %v686 = vmul.f32 %v660, 1.442695
        %v687 = vpow.pop %v686
        %v688 = vmul.f32 %v661, 1.442695
        %v689 = vpow.pop %v688
        %v690 = vmul.f32 %v662, 1.442695
        %v691 = vpow.pop %v690
        %v692 = vmul.f32 %v663, 1.442695
        %v693 = vpow.pop %v692
        %v694 = vmul.f32 %v664, 1.442695
        %v695 = vpow.pop %v694
        %v696 = vmul.f32 %v665, 1.442695
        %v697 = vpow.pop %v696
        %v698 = vadd.f32 %v667, 1.0
        %v699 = vadd.f32 %v669, 1.0
        %v700 = vadd.f32 %v671, 1.0
        %v701 = vadd.f32 %v673, 1.0
        %v702 = vadd.f32 %v675, 1.0
        %v703 = vadd.f32 %v677, 1.0
        %v704 = vadd.f32 %v679, 1.0
        %v705 = vadd.f32 %v681, 1.0
        %v706 = vadd.f32 %v683, 1.0
        %v707 = vadd.f32 %v685, 1.0
        %v708 = vadd.f32 %v687, 1.0
        %v709 = vadd.f32 %v689, 1.0
        %v710 = vadd.f32 %v691, 1.0
        %v711 = vadd.f32 %v693, 1.0
        %v712 = vadd.f32 %v695, 1.0
        %v713 = vadd.f32 %v697, 1.0
        %v714 = vrcp.pop %v698
        %v715 = vmul.f32 %v698, %v714
        %v716 = vsub.f32 1.0, %v715
        %v717 = vmul.f32 %v714, %v716
        %v718 = vadd.f32 %v714, %v717
        %vm719 = vweird.f32 %v698
        %vm720 = vweird.f32 %v714
        %vm721 = vmor %vm719, %vm720
        %v722 = vsel %vm721, %v714, %v718
        %v723 = vand.u32 2147483647, %v698
        %vm724 = vcmp.eq.f32.partialorder %v723, 8.507059e+37
        %v725 = vand.u32 %v698, 2147483648
        %v726 = vor.u32 1.1754944e-38, %v725
        %v727 = vsel %vm724, %v726, %v722
        %v728 = vmul.f32 1.0, %v727
        %v729 = vrcp.pop %v699
        %v730 = vmul.f32 %v699, %v729
        %v731 = vsub.f32 1.0, %v730
        %v732 = vmul.f32 %v729, %v731
        %v733 = vadd.f32 %v729, %v732
        %vm734 = vweird.f32 %v699
        %vm735 = vweird.f32 %v729
        %vm736 = vmor %vm734, %vm735
        %v737 = vsel %vm736, %v729, %v733
        %v738 = vand.u32 2147483647, %v699
        %vm739 = vcmp.eq.f32.partialorder %v738, 8.507059e+37
        %v740 = vand.u32 %v699, 2147483648
        %v741 = vor.u32 1.1754944e-38, %v740
        %v742 = vsel %vm739, %v741, %v737
        %v743 = vmul.f32 1.0, %v742
        %v744 = vrcp.pop %v700
        %v745 = vmul.f32 %v700, %v744
        %v746 = vsub.f32 1.0, %v745
        %v747 = vmul.f32 %v744, %v746
        %v748 = vadd.f32 %v744, %v747
        %vm749 = vweird.f32 %v700
        %vm750 = vweird.f32 %v744
        %vm751 = vmor %vm749, %vm750
        %v752 = vsel %vm751, %v744, %v748
        %v753 = vand.u32 2147483647, %v700
        %vm754 = vcmp.eq.f32.partialorder %v753, 8.507059e+37
        %v755 = vand.u32 %v700, 2147483648
        %v756 = vor.u32 1.1754944e-38, %v755
        %v757 = vsel %vm754, %v756, %v752
        %v758 = vmul.f32 1.0, %v757
        %v759 = vrcp.pop %v701
        %v760 = vmul.f32 %v701, %v759
        %v761 = vsub.f32 1.0, %v760
        %v762 = vmul.f32 %v759, %v761
        %v763 = vadd.f32 %v759, %v762
        %vm764 = vweird.f32 %v701
        %vm765 = vweird.f32 %v759
        %vm766 = vmor %vm764, %vm765
        %v767 = vsel %vm766, %v759, %v763
        %v768 = vand.u32 2147483647, %v701
        %vm769 = vcmp.eq.f32.partialorder %v768, 8.507059e+37
        %v770 = vand.u32 %v701, 2147483648
        %v771 = vor.u32 1.1754944e-38, %v770
        %v772 = vsel %vm769, %v771, %v767
        %v773 = vmul.f32 1.0, %v772
        %v774 = vrcp.pop %v702
        %v775 = vmul.f32 %v702, %v774
        %v776 = vsub.f32 1.0, %v775
        %v777 = vmul.f32 %v774, %v776
        %v778 = vadd.f32 %v774, %v777
        %vm779 = vweird.f32 %v702
        %vm780 = vweird.f32 %v774
        %vm781 = vmor %vm779, %vm780
        %v782 = vsel %vm781, %v774, %v778
        %v783 = vand.u32 2147483647, %v702
        %vm784 = vcmp.eq.f32.partialorder %v783, 8.507059e+37
        %v785 = vand.u32 %v702, 2147483648
        %v786 = vor.u32 1.1754944e-38, %v785
        %v787 = vsel %vm784, %v786, %v782
        %v788 = vmul.f32 1.0, %v787
        %v789 = vrcp.pop %v703
        %v790 = vmul.f32 %v703, %v789
        %v791 = vsub.f32 1.0, %v790
        %v792 = vmul.f32 %v789, %v791
        %v793 = vadd.f32 %v789, %v792
        %vm794 = vweird.f32 %v703
        %vm795 = vweird.f32 %v789
        %vm796 = vmor %vm794, %vm795
        %v797 = vsel %vm796, %v789, %v793
        %v798 = vand.u32 2147483647, %v703
        %vm799 = vcmp.eq.f32.partialorder %v798, 8.507059e+37
        %v800 = vand.u32 %v703, 2147483648
        %v801 = vor.u32 1.1754944e-38, %v800
        %v802 = vsel %vm799, %v801, %v797
        %v803 = vmul.f32 1.0, %v802
        %v804 = vrcp.pop %v704
        %v805 = vmul.f32 %v704, %v804
        %v806 = vsub.f32 1.0, %v805
        %v807 = vmul.f32 %v804, %v806
        %v808 = vadd.f32 %v804, %v807
        %vm809 = vweird.f32 %v704
        %vm810 = vweird.f32 %v804
        %vm811 = vmor %vm809, %vm810
        %v812 = vsel %vm811, %v804, %v808
        %v813 = vand.u32 2147483647, %v704
        %vm814 = vcmp.eq.f32.partialorder %v813, 8.507059e+37
        %v815 = vand.u32 %v704, 2147483648
        %v816 = vor.u32 1.1754944e-38, %v815
        %v817 = vsel %vm814, %v816, %v812
        %v818 = vmul.f32 1.0, %v817
        %v819 = vrcp.pop %v705
        %v820 = vmul.f32 %v705, %v819
        %v821 = vsub.f32 1.0, %v820
        %v822 = vmul.f32 %v819, %v821
        %v823 = vadd.f32 %v819, %v822
        %vm824 = vweird.f32 %v705
        %vm825 = vweird.f32 %v819
        %vm826 = vmor %vm824, %vm825
        %v827 = vsel %vm826, %v819, %v823
        %v828 = vand.u32 2147483647, %v705
        %vm829 = vcmp.eq.f32.partialorder %v828, 8.507059e+37
        %v830 = vand.u32 %v705, 2147483648
        %v831 = vor.u32 1.1754944e-38, %v830
        %v832 = vsel %vm829, %v831, %v827
        %v833 = vmul.f32 1.0, %v832
        %v834 = vrcp.pop %v706
        %v835 = vmul.f32 %v706, %v834
        %v836 = vsub.f32 1.0, %v835
        %v837 = vmul.f32 %v834, %v836
        %v838 = vadd.f32 %v834, %v837
        %vm839 = vweird.f32 %v706
        %vm840 = vweird.f32 %v834
        %vm841 = vmor %vm839, %vm840
        %v842 = vsel %vm841, %v834, %v838
        %v843 = vand.u32 2147483647, %v706
        %vm844 = vcmp.eq.f32.partialorder %v843, 8.507059e+37
        %v845 = vand.u32 %v706, 2147483648
        %v846 = vor.u32 1.1754944e-38, %v845
        %v847 = vsel %vm844, %v846, %v842
        %v848 = vmul.f32 1.0, %v847
        %v849 = vrcp.pop %v707
        %v850 = vmul.f32 %v707, %v849
        %v851 = vsub.f32 1.0, %v850
        %v852 = vmul.f32 %v849, %v851
        %v853 = vadd.f32 %v849, %v852
        %vm854 = vweird.f32 %v707
        %vm855 = vweird.f32 %v849
        %vm856 = vmor %vm854, %vm855
        %v857 = vsel %vm856, %v849, %v853
        %v858 = vand.u32 2147483647, %v707
        %vm859 = vcmp.eq.f32.partialorder %v858, 8.507059e+37
        %v860 = vand.u32 %v707, 2147483648
        %v861 = vor.u32 1.1754944e-38, %v860
        %v862 = vsel %vm859, %v861, %v857
        %v863 = vmul.f32 1.0, %v862
        %v864 = vrcp.pop %v708
        %v865 = vmul.f32 %v708, %v864
        %v866 = vsub.f32 1.0, %v865
        %v867 = vmul.f32 %v864, %v866
        %v868 = vadd.f32 %v864, %v867
        %vm869 = vweird.f32 %v708
        %vm870 = vweird.f32 %v864
        %vm871 = vmor %vm869, %vm870
        %v872 = vsel %vm871, %v864, %v868
        %v873 = vand.u32 2147483647, %v708
        %vm874 = vcmp.eq.f32.partialorder %v873, 8.507059e+37
        %v875 = vand.u32 %v708, 2147483648
        %v876 = vor.u32 1.1754944e-38, %v875
        %v877 = vsel %vm874, %v876, %v872
        %v878 = vmul.f32 1.0, %v877
        %v879 = vrcp.pop %v709
        %v880 = vmul.f32 %v709, %v879
        %v881 = vsub.f32 1.0, %v880
        %v882 = vmul.f32 %v879, %v881
        %v883 = vadd.f32 %v879, %v882
        %vm884 = vweird.f32 %v709
        %vm885 = vweird.f32 %v879
        %vm886 = vmor %vm884, %vm885
        %v887 = vsel %vm886, %v879, %v883
        %v888 = vand.u32 2147483647, %v709
        %vm889 = vcmp.eq.f32.partialorder %v888, 8.507059e+37
        %v890 = vand.u32 %v709, 2147483648
        %v891 = vor.u32 1.1754944e-38, %v890
        %v892 = vsel %vm889, %v891, %v887
        %v893 = vmul.f32 1.0, %v892
        %v894 = vrcp.pop %v710
        %v895 = vmul.f32 %v710, %v894
        %v896 = vsub.f32 1.0, %v895
        %v897 = vmul.f32 %v894, %v896
        %v898 = vadd.f32 %v894, %v897
        %vm899 = vweird.f32 %v710
        %vm900 = vweird.f32 %v894
        %vm901 = vmor %vm899, %vm900
        %v902 = vsel %vm901, %v894, %v898
        %v903 = vand.u32 2147483647, %v710
        %vm904 = vcmp.eq.f32.partialorder %v903, 8.507059e+37
        %v905 = vand.u32 %v710, 2147483648
        %v906 = vor.u32 1.1754944e-38, %v905
        %v907 = vsel %vm904, %v906, %v902
        %v908 = vmul.f32 1.0, %v907
        %v909 = vrcp.pop %v711
        %v910 = vmul.f32 %v711, %v909
        %v911 = vsub.f32 1.0, %v910
        %v912 = vmul.f32 %v909, %v911
        %v913 = vadd.f32 %v909, %v912
        %vm914 = vweird.f32 %v711
        %vm915 = vweird.f32 %v909
        %vm916 = vmor %vm914, %vm915
        %v917 = vsel %vm916, %v909, %v913
        %v918 = vand.u32 2147483647, %v711
        %vm919 = vcmp.eq.f32.partialorder %v918, 8.507059e+37
        %v920 = vand.u32 %v711, 2147483648
        %v921 = vor.u32 1.1754944e-38, %v920
        %v922 = vsel %vm919, %v921, %v917
        %v923 = vmul.f32 1.0, %v922
        %v924 = vrcp.pop %v712
        %v925 = vmul.f32 %v712, %v924
        %v926 = vsub.f32 1.0, %v925
        %v927 = vmul.f32 %v924, %v926
        %v928 = vadd.f32 %v924, %v927
        %vm929 = vweird.f32 %v712
        %vm930 = vweird.f32 %v924
        %vm931 = vmor %vm929, %vm930
        %v932 = vsel %vm931, %v924, %v928
        %v933 = vand.u32 2147483647, %v712
        %vm934 = vcmp.eq.f32.partialorder %v933, 8.507059e+37
        %v935 = vand.u32 %v712, 2147483648
        %v936 = vor.u32 1.1754944e-38, %v935
        %v937 = vsel %vm934, %v936, %v932
        %v938 = vmul.f32 1.0, %v937
        %v939 = vrcp.pop %v713
        %v940 = vmul.f32 %v713, %v939
        %v941 = vsub.f32 1.0, %v940
        %v942 = vmul.f32 %v939, %v941
        %v943 = vadd.f32 %v939, %v942
        %vm944 = vweird.f32 %v713
        %vm945 = vweird.f32 %v939
        %vm946 = vmor %vm944, %vm945
        %v947 = vsel %vm946, %v939, %v943
        %v948 = vand.u32 2147483647, %v713
        %vm949 = vcmp.eq.f32.partialorder %v948, 8.507059e+37
        %v950 = vand.u32 %v713, 2147483648
        %v951 = vor.u32 1.1754944e-38, %v950
        %v952 = vsel %vm949, %v951, %v947
        %v953 = vmul.f32 1.0, %v952
        %v954 = vld [vmem:[%s4] sm:$0xf]
        %v955 = vld [vmem:[%s4 + $0x4] sm:$0xf]
        %v956 = vld [vmem:[%s4 + $0x8] sm:$0xf]
        %v957 = vld [vmem:[%s4 + $0xc] sm:$0xf]
        %v958 = vld [vmem:[%s4 + $0x10] sm:$0xf]
        %v959 = vld [vmem:[%s4 + $0x14] sm:$0xf]
        %v960 = vld [vmem:[%s4 + $0x18] sm:$0xf]
        %v961 = vld [vmem:[%s4 + $0x1c] sm:$0xf]
        %v962 = vld [vmem:[%s4 + $0x20] sm:$0xf]
        %v963 = vld [vmem:[%s4 + $0x24] sm:$0xf]
        %v964 = vld [vmem:[%s4 + $0x28] sm:$0xf]
        %v965 = vld [vmem:[%s4 + $0x2c] sm:$0xf]
        %v966 = vld [vmem:[%s4 + $0x30] sm:$0xf]
        %v967 = vld [vmem:[%s4 + $0x34] sm:$0xf]
        %v968 = vld [vmem:[%s4 + $0x38] sm:$0xf]
        %v969 = vld [vmem:[%s4 + $0x3c] sm:$0xf]
        %v970 = vpack.c.bf16 %v498, %v497
        %v971 = vpack.c.bf16 %v500, %v499
        %v972 = vpack.c.bf16 %v502, %v501
        %v973 = vpack.c.bf16 %v504, %v503
        %v974 = vpack.c.bf16 %v506, %v505
        %v975 = vpack.c.bf16 %v508, %v507
        %v976 = vpack.c.bf16 %v510, %v509
        %v977 = vpack.c.bf16 %v512, %v511
        %v978 = vld [vmem:[%s5] sm:$0xff]
        %v979 = vld [vmem:[%s5 + $0x8] sm:$0xff]
        %v980 = vld [vmem:[%s5 + $0x10] sm:$0xff]
        %v981 = vld [vmem:[%s5 + $0x18] sm:$0xff]
        %v982 = vld [vmem:[%s5 + $0x20] sm:$0xff]
        %v983 = vld [vmem:[%s5 + $0x28] sm:$0xff]
        %v984 = vld [vmem:[%s5 + $0x30] sm:$0xff]
        %v985 = vld [vmem:[%s5 + $0x38] sm:$0xff]
        %v986 = vld [vmem:[%s5 + $0x40] sm:$0xff]
        %v987 = vld [vmem:[%s5 + $0x48] sm:$0xff]
        %v988 = vld [vmem:[%s5 + $0x50] sm:$0xff]
        %v989 = vld [vmem:[%s5 + $0x58] sm:$0xff]
        %v990 = vld [vmem:[%s5 + $0x60] sm:$0xff]
        %v991 = vld [vmem:[%s5 + $0x68] sm:$0xff]
        %v992 = vld [vmem:[%s5 + $0x70] sm:$0xff]
        %v993 = vld [vmem:[%s5 + $0x78] sm:$0xff]
        %v1010 = vunpack.c.l.b16 %v954
        %v1011 = vunpack.c.l.b16 %v955
        %v1012 = vunpack.c.l.b16 %v956
        %v1013 = vunpack.c.l.b16 %v957
        %v1014 = vunpack.c.l.b16 %v958
        %v1015 = vunpack.c.l.b16 %v959
        %v1016 = vunpack.c.l.b16 %v960
        %v1017 = vunpack.c.l.b16 %v961
        %v1018 = vunpack.c.l.b16 %v962
        %v1019 = vunpack.c.l.b16 %v963
        %v1020 = vunpack.c.l.b16 %v964
        %v1021 = vunpack.c.l.b16 %v965
        %v1022 = vunpack.c.l.b16 %v966
        %v1023 = vunpack.c.l.b16 %v967
        %v1024 = vunpack.c.l.b16 %v968
        %v1025 = vunpack.c.l.b16 %v969
        %v1026 = vpack.c.b16 %v1011, %v1010
        %v1027 = vpack.c.b16 %v1013, %v1012
        %v1028 = vpack.c.b16 %v1015, %v1014
        %v1029 = vpack.c.b16 %v1017, %v1016
        %v1030 = vpack.c.b16 %v1019, %v1018
        %v1031 = vpack.c.b16 %v1021, %v1020
        %v1032 = vpack.c.b16 %v1023, %v1022
        %v1033 = vpack.c.b16 %v1025, %v1024
        %1042 = vmatpush.bf16.msra.mxu0 %v977
        %1043 = vmatpush.bf16.msra.mxu0 %v976
        %1044 = vmatpush.bf16.msra.mxu0 %v975
        %1045 = vmatpush.bf16.msra.mxu0 %v974
        %1046 = vmatpush.bf16.msra.mxu0 %v973
        %1047 = vmatpush.bf16.msra.mxu0 %v972
        %1048 = vmatpush.bf16.msra.mxu0 %v971
        %1049 = vmatpush.bf16.msra.mxu0 %v970
        %1050 = vmatmul.bf16.gmra.mxu0 %v1026
        %v1051 = vpop.f32.mrf.mxu0
        %v1052 = vadd.f32 %v978, %v1051
        %v1053 = vpop.f32.mrf.mxu0
        %v1054 = vadd.f32 %v979, %v1053
        %1055 = vmatmul.bf16.gmra.mxu0 %v1027
        %v1056 = vpop.f32.mrf.mxu0
        %v1057 = vadd.f32 %v980, %v1056
        %v1058 = vpop.f32.mrf.mxu0
        %v1059 = vadd.f32 %v981, %v1058
        %1060 = vmatmul.bf16.gmra.mxu0 %v1028
        %v1061 = vpop.f32.mrf.mxu0
        %v1062 = vadd.f32 %v982, %v1061
        %v1063 = vpop.f32.mrf.mxu0
        %v1064 = vadd.f32 %v983, %v1063
        %1065 = vmatmul.bf16.gmra.mxu0 %v1029
        %v1066 = vpop.f32.mrf.mxu0
        %v1067 = vadd.f32 %v984, %v1066
        %v1068 = vpop.f32.mrf.mxu0
        %v1069 = vadd.f32 %v985, %v1068
        %1070 = vmatmul.bf16.gmra.mxu0 %v1030
        %v1071 = vpop.f32.mrf.mxu0
        %v1072 = vadd.f32 %v986, %v1071
        %v1073 = vpop.f32.mrf.mxu0
        %v1074 = vadd.f32 %v987, %v1073
        %1075 = vmatmul.bf16.gmra.mxu0 %v1031
        %v1076 = vpop.f32.mrf.mxu0
        %v1077 = vadd.f32 %v988, %v1076
        %v1078 = vpop.f32.mrf.mxu0
        %v1079 = vadd.f32 %v989, %v1078
        %1080 = vmatmul.bf16.gmra.mxu0 %v1032
        %v1081 = vpop.f32.mrf.mxu0
        %v1082 = vadd.f32 %v990, %v1081
        %v1083 = vpop.f32.mrf.mxu0
        %v1084 = vadd.f32 %v991, %v1083
        %1085 = vmatmul.bf16.gmra.mxu0 %v1033
        %v1086 = vpop.f32.mrf.mxu0
        %v1087 = vadd.f32 %v992, %v1086
        %v1088 = vpop.f32.mrf.mxu0
        %v1089 = vadd.f32 %v993, %v1088
        %1090 = vdwg.mxu0
        %v1091 = vxor.u32 %v1052, 2147483648
        %v1092 = vxor.u32 %v1054, 2147483648
        %v1093 = vxor.u32 %v1057, 2147483648
        %v1094 = vxor.u32 %v1059, 2147483648
        %v1095 = vxor.u32 %v1062, 2147483648
        %v1096 = vxor.u32 %v1064, 2147483648
        %v1097 = vxor.u32 %v1067, 2147483648
        %v1098 = vxor.u32 %v1069, 2147483648
        %v1099 = vxor.u32 %v1072, 2147483648
        %v1100 = vxor.u32 %v1074, 2147483648
        %v1101 = vxor.u32 %v1077, 2147483648
        %v1102 = vxor.u32 %v1079, 2147483648
        %v1103 = vxor.u32 %v1082, 2147483648
        %v1104 = vxor.u32 %v1084, 2147483648
        %v1105 = vxor.u32 %v1087, 2147483648
        %v1106 = vxor.u32 %v1089, 2147483648
        %v1107 = vmul.f32 %v1091, 1.442695
        %v1108 = vpow.pop %v1107
        %v1109 = vmul.f32 %v1092, 1.442695
        %v1110 = vpow.pop %v1109
        %v1111 = vmul.f32 %v1093, 1.442695
        %v1112 = vpow.pop %v1111
        %v1113 = vmul.f32 %v1094, 1.442695
        %v1114 = vpow.pop %v1113
        %v1115 = vmul.f32 %v1095, 1.442695
        %v1116 = vpow.pop %v1115
        %v1117 = vmul.f32 %v1096, 1.442695
        %v1118 = vpow.pop %v1117
        %v1119 = vmul.f32 %v1097, 1.442695
        %v1120 = vpow.pop %v1119
        %v1121 = vmul.f32 %v1098, 1.442695
        %v1122 = vpow.pop %v1121
        %v1123 = vmul.f32 %v1099, 1.442695
        %v1124 = vpow.pop %v1123
        %v1125 = vmul.f32 %v1100, 1.442695
        %v1126 = vpow.pop %v1125
        %v1127 = vmul.f32 %v1101, 1.442695
        %v1128 = vpow.pop %v1127
        %v1129 = vmul.f32 %v1102, 1.442695
        %v1130 = vpow.pop %v1129
        %v1131 = vmul.f32 %v1103, 1.442695
        %v1132 = vpow.pop %v1131
        %v1133 = vmul.f32 %v1104, 1.442695
        %v1134 = vpow.pop %v1133
        %v1135 = vmul.f32 %v1105, 1.442695
        %v1136 = vpow.pop %v1135
        %v1137 = vmul.f32 %v1106, 1.442695
        %v1138 = vpow.pop %v1137
        %v1139 = vadd.f32 %v1108, 1.0
        %v1140 = vadd.f32 %v1110, 1.0
        %v1141 = vadd.f32 %v1112, 1.0
        %v1142 = vadd.f32 %v1114, 1.0
        %v1143 = vadd.f32 %v1116, 1.0
        %v1144 = vadd.f32 %v1118, 1.0
        %v1145 = vadd.f32 %v1120, 1.0
        %v1146 = vadd.f32 %v1122, 1.0
        %v1147 = vadd.f32 %v1124, 1.0
        %v1148 = vadd.f32 %v1126, 1.0
        %v1149 = vadd.f32 %v1128, 1.0
        %v1150 = vadd.f32 %v1130, 1.0
        %v1151 = vadd.f32 %v1132, 1.0
        %v1152 = vadd.f32 %v1134, 1.0
        %v1153 = vadd.f32 %v1136, 1.0
        %v1154 = vadd.f32 %v1138, 1.0
        %v1155 = vrcp.pop %v1139
        %v1156 = vmul.f32 %v1139, %v1155
        %v1157 = vsub.f32 1.0, %v1156
        %v1158 = vmul.f32 %v1155, %v1157
        %v1159 = vadd.f32 %v1155, %v1158
        %vm1160 = vweird.f32 %v1139
        %vm1161 = vweird.f32 %v1155
        %vm1162 = vmor %vm1160, %vm1161
        %v1163 = vsel %vm1162, %v1155, %v1159
        %v1164 = vand.u32 2147483647, %v1139
        %vm1165 = vcmp.eq.f32.partialorder %v1164, 8.507059e+37
        %v1166 = vand.u32 %v1139, 2147483648
        %v1167 = vor.u32 1.1754944e-38, %v1166
        %v1168 = vsel %vm1165, %v1167, %v1163
        %v1169 = vmul.f32 1.0, %v1168
        %v1170 = vrcp.pop %v1140
        %v1171 = vmul.f32 %v1140, %v1170
        %v1172 = vsub.f32 1.0, %v1171
        %v1173 = vmul.f32 %v1170, %v1172
        %v1174 = vadd.f32 %v1170, %v1173
        %vm1175 = vweird.f32 %v1140
        %vm1176 = vweird.f32 %v1170
        %vm1177 = vmor %vm1175, %vm1176
        %v1178 = vsel %vm1177, %v1170, %v1174
        %v1179 = vand.u32 2147483647, %v1140
        %vm1180 = vcmp.eq.f32.partialorder %v1179, 8.507059e+37
        %v1181 = vand.u32 %v1140, 2147483648
        %v1182 = vor.u32 1.1754944e-38, %v1181
        %v1183 = vsel %vm1180, %v1182, %v1178
        %v1184 = vmul.f32 1.0, %v1183
        %v1185 = vrcp.pop %v1141
        %v1186 = vmul.f32 %v1141, %v1185
        %v1187 = vsub.f32 1.0, %v1186
        %v1188 = vmul.f32 %v1185, %v1187
        %v1189 = vadd.f32 %v1185, %v1188
        %vm1190 = vweird.f32 %v1141
        %vm1191 = vweird.f32 %v1185
        %vm1192 = vmor %vm1190, %vm1191
        %v1193 = vsel %vm1192, %v1185, %v1189
        %v1194 = vand.u32 2147483647, %v1141
        %vm1195 = vcmp.eq.f32.partialorder %v1194, 8.507059e+37
        %v1196 = vand.u32 %v1141, 2147483648
        %v1197 = vor.u32 1.1754944e-38, %v1196
        %v1198 = vsel %vm1195, %v1197, %v1193
        %v1199 = vmul.f32 1.0, %v1198
        %v1200 = vrcp.pop %v1142
        %v1201 = vmul.f32 %v1142, %v1200
        %v1202 = vsub.f32 1.0, %v1201
        %v1203 = vmul.f32 %v1200, %v1202
        %v1204 = vadd.f32 %v1200, %v1203
        %vm1205 = vweird.f32 %v1142
        %vm1206 = vweird.f32 %v1200
        %vm1207 = vmor %vm1205, %vm1206
        %v1208 = vsel %vm1207, %v1200, %v1204
        %v1209 = vand.u32 2147483647, %v1142
        %vm1210 = vcmp.eq.f32.partialorder %v1209, 8.507059e+37
        %v1211 = vand.u32 %v1142, 2147483648
        %v1212 = vor.u32 1.1754944e-38, %v1211
        %v1213 = vsel %vm1210, %v1212, %v1208
        %v1214 = vmul.f32 1.0, %v1213
        %v1215 = vrcp.pop %v1143
        %v1216 = vmul.f32 %v1143, %v1215
        %v1217 = vsub.f32 1.0, %v1216
        %v1218 = vmul.f32 %v1215, %v1217
        %v1219 = vadd.f32 %v1215, %v1218
        %vm1220 = vweird.f32 %v1143
        %vm1221 = vweird.f32 %v1215
        %vm1222 = vmor %vm1220, %vm1221
        %v1223 = vsel %vm1222, %v1215, %v1219
        %v1224 = vand.u32 2147483647, %v1143
        %vm1225 = vcmp.eq.f32.partialorder %v1224, 8.507059e+37
        %v1226 = vand.u32 %v1143, 2147483648
        %v1227 = vor.u32 1.1754944e-38, %v1226
        %v1228 = vsel %vm1225, %v1227, %v1223
        %v1229 = vmul.f32 1.0, %v1228
        %v1230 = vrcp.pop %v1144
        %v1231 = vmul.f32 %v1144, %v1230
        %v1232 = vsub.f32 1.0, %v1231
        %v1233 = vmul.f32 %v1230, %v1232
        %v1234 = vadd.f32 %v1230, %v1233
        %vm1235 = vweird.f32 %v1144
        %vm1236 = vweird.f32 %v1230
        %vm1237 = vmor %vm1235, %vm1236
        %v1238 = vsel %vm1237, %v1230, %v1234
        %v1239 = vand.u32 2147483647, %v1144
        %vm1240 = vcmp.eq.f32.partialorder %v1239, 8.507059e+37
        %v1241 = vand.u32 %v1144, 2147483648
        %v1242 = vor.u32 1.1754944e-38, %v1241
        %v1243 = vsel %vm1240, %v1242, %v1238
        %v1244 = vmul.f32 1.0, %v1243
        %v1245 = vrcp.pop %v1145
        %v1246 = vmul.f32 %v1145, %v1245
        %v1247 = vsub.f32 1.0, %v1246
        %v1248 = vmul.f32 %v1245, %v1247
        %v1249 = vadd.f32 %v1245, %v1248
        %vm1250 = vweird.f32 %v1145
        %vm1251 = vweird.f32 %v1245
        %vm1252 = vmor %vm1250, %vm1251
        %v1253 = vsel %vm1252, %v1245, %v1249
        %v1254 = vand.u32 2147483647, %v1145
        %vm1255 = vcmp.eq.f32.partialorder %v1254, 8.507059e+37
        %v1256 = vand.u32 %v1145, 2147483648
        %v1257 = vor.u32 1.1754944e-38, %v1256
        %v1258 = vsel %vm1255, %v1257, %v1253
        %v1259 = vmul.f32 1.0, %v1258
        %v1260 = vrcp.pop %v1146
        %v1261 = vmul.f32 %v1146, %v1260
        %v1262 = vsub.f32 1.0, %v1261
        %v1263 = vmul.f32 %v1260, %v1262
        %v1264 = vadd.f32 %v1260, %v1263
        %vm1265 = vweird.f32 %v1146
        %vm1266 = vweird.f32 %v1260
        %vm1267 = vmor %vm1265, %vm1266
        %v1268 = vsel %vm1267, %v1260, %v1264
        %v1269 = vand.u32 2147483647, %v1146
        %vm1270 = vcmp.eq.f32.partialorder %v1269, 8.507059e+37
        %v1271 = vand.u32 %v1146, 2147483648
        %v1272 = vor.u32 1.1754944e-38, %v1271
        %v1273 = vsel %vm1270, %v1272, %v1268
        %v1274 = vmul.f32 1.0, %v1273
        %v1275 = vrcp.pop %v1147
        %v1276 = vmul.f32 %v1147, %v1275
        %v1277 = vsub.f32 1.0, %v1276
        %v1278 = vmul.f32 %v1275, %v1277
        %v1279 = vadd.f32 %v1275, %v1278
        %vm1280 = vweird.f32 %v1147
        %vm1281 = vweird.f32 %v1275
        %vm1282 = vmor %vm1280, %vm1281
        %v1283 = vsel %vm1282, %v1275, %v1279
        %v1284 = vand.u32 2147483647, %v1147
        %vm1285 = vcmp.eq.f32.partialorder %v1284, 8.507059e+37
        %v1286 = vand.u32 %v1147, 2147483648
        %v1287 = vor.u32 1.1754944e-38, %v1286
        %v1288 = vsel %vm1285, %v1287, %v1283
        %v1289 = vmul.f32 1.0, %v1288
        %v1290 = vrcp.pop %v1148
        %v1291 = vmul.f32 %v1148, %v1290
        %v1292 = vsub.f32 1.0, %v1291
        %v1293 = vmul.f32 %v1290, %v1292
        %v1294 = vadd.f32 %v1290, %v1293
        %vm1295 = vweird.f32 %v1148
        %vm1296 = vweird.f32 %v1290
        %vm1297 = vmor %vm1295, %vm1296
        %v1298 = vsel %vm1297, %v1290, %v1294
        %v1299 = vand.u32 2147483647, %v1148
        %vm1300 = vcmp.eq.f32.partialorder %v1299, 8.507059e+37
        %v1301 = vand.u32 %v1148, 2147483648
        %v1302 = vor.u32 1.1754944e-38, %v1301
        %v1303 = vsel %vm1300, %v1302, %v1298
        %v1304 = vmul.f32 1.0, %v1303
        %v1305 = vrcp.pop %v1149
        %v1306 = vmul.f32 %v1149, %v1305
        %v1307 = vsub.f32 1.0, %v1306
        %v1308 = vmul.f32 %v1305, %v1307
        %v1309 = vadd.f32 %v1305, %v1308
        %vm1310 = vweird.f32 %v1149
        %vm1311 = vweird.f32 %v1305
        %vm1312 = vmor %vm1310, %vm1311
        %v1313 = vsel %vm1312, %v1305, %v1309
        %v1314 = vand.u32 2147483647, %v1149
        %vm1315 = vcmp.eq.f32.partialorder %v1314, 8.507059e+37
        %v1316 = vand.u32 %v1149, 2147483648
        %v1317 = vor.u32 1.1754944e-38, %v1316
        %v1318 = vsel %vm1315, %v1317, %v1313
        %v1319 = vmul.f32 1.0, %v1318
        %v1320 = vrcp.pop %v1150
        %v1321 = vmul.f32 %v1150, %v1320
        %v1322 = vsub.f32 1.0, %v1321
        %v1323 = vmul.f32 %v1320, %v1322
        %v1324 = vadd.f32 %v1320, %v1323
        %vm1325 = vweird.f32 %v1150
        %vm1326 = vweird.f32 %v1320
        %vm1327 = vmor %vm1325, %vm1326
        %v1328 = vsel %vm1327, %v1320, %v1324
        %v1329 = vand.u32 2147483647, %v1150
        %vm1330 = vcmp.eq.f32.partialorder %v1329, 8.507059e+37
        %v1331 = vand.u32 %v1150, 2147483648
        %v1332 = vor.u32 1.1754944e-38, %v1331
        %v1333 = vsel %vm1330, %v1332, %v1328
        %v1334 = vmul.f32 1.0, %v1333
        %v1335 = vrcp.pop %v1151
        %v1336 = vmul.f32 %v1151, %v1335
        %v1337 = vsub.f32 1.0, %v1336
        %v1338 = vmul.f32 %v1335, %v1337
        %v1339 = vadd.f32 %v1335, %v1338
        %vm1340 = vweird.f32 %v1151
        %vm1341 = vweird.f32 %v1335
        %vm1342 = vmor %vm1340, %vm1341
        %v1343 = vsel %vm1342, %v1335, %v1339
        %v1344 = vand.u32 2147483647, %v1151
        %vm1345 = vcmp.eq.f32.partialorder %v1344, 8.507059e+37
        %v1346 = vand.u32 %v1151, 2147483648
        %v1347 = vor.u32 1.1754944e-38, %v1346
        %v1348 = vsel %vm1345, %v1347, %v1343
        %v1349 = vmul.f32 1.0, %v1348
        %v1350 = vrcp.pop %v1152
        %v1351 = vmul.f32 %v1152, %v1350
        %v1352 = vsub.f32 1.0, %v1351
        %v1353 = vmul.f32 %v1350, %v1352
        %v1354 = vadd.f32 %v1350, %v1353
        %vm1355 = vweird.f32 %v1152
        %vm1356 = vweird.f32 %v1350
        %vm1357 = vmor %vm1355, %vm1356
        %v1358 = vsel %vm1357, %v1350, %v1354
        %v1359 = vand.u32 2147483647, %v1152
        %vm1360 = vcmp.eq.f32.partialorder %v1359, 8.507059e+37
        %v1361 = vand.u32 %v1152, 2147483648
        %v1362 = vor.u32 1.1754944e-38, %v1361
        %v1363 = vsel %vm1360, %v1362, %v1358
        %v1364 = vmul.f32 1.0, %v1363
        %v1365 = vrcp.pop %v1153
        %v1366 = vmul.f32 %v1153, %v1365
        %v1367 = vsub.f32 1.0, %v1366
        %v1368 = vmul.f32 %v1365, %v1367
        %v1369 = vadd.f32 %v1365, %v1368
        %vm1370 = vweird.f32 %v1153
        %vm1371 = vweird.f32 %v1365
        %vm1372 = vmor %vm1370, %vm1371
        %v1373 = vsel %vm1372, %v1365, %v1369
        %v1374 = vand.u32 2147483647, %v1153
        %vm1375 = vcmp.eq.f32.partialorder %v1374, 8.507059e+37
        %v1376 = vand.u32 %v1153, 2147483648
        %v1377 = vor.u32 1.1754944e-38, %v1376
        %v1378 = vsel %vm1375, %v1377, %v1373
        %v1379 = vmul.f32 1.0, %v1378
        %v1380 = vrcp.pop %v1154
        %v1381 = vmul.f32 %v1154, %v1380
        %v1382 = vsub.f32 1.0, %v1381
        %v1383 = vmul.f32 %v1380, %v1382
        %v1384 = vadd.f32 %v1380, %v1383
        %vm1385 = vweird.f32 %v1154
        %vm1386 = vweird.f32 %v1380
        %vm1387 = vmor %vm1385, %vm1386
        %v1388 = vsel %vm1387, %v1380, %v1384
        %v1389 = vand.u32 2147483647, %v1154
        %vm1390 = vcmp.eq.f32.partialorder %v1389, 8.507059e+37
        %v1391 = vand.u32 %v1154, 2147483648
        %v1392 = vor.u32 1.1754944e-38, %v1391
        %v1393 = vsel %vm1390, %v1392, %v1388
        %v1394 = vmul.f32 1.0, %v1393
        %1396 = vset.pattern.permute.xlu0 0
        %1397 = vperm.xlu0 %1396, %v728
        %v1398 = vpop.permute.xlu0 %1397
        %1401 = vset.pattern.permute.xlu0 0
        %1402 = vperm.xlu0 %1401, %v743
        %v1403 = vpop.permute.xlu0 %1402
        %1406 = vset.pattern.permute.xlu0 0
        %1407 = vperm.xlu0 %1406, %v758
        %v1408 = vpop.permute.xlu0 %1407
        %1411 = vset.pattern.permute.xlu0 0
        %1412 = vperm.xlu0 %1411, %v773
        %v1413 = vpop.permute.xlu0 %1412
        %1416 = vset.pattern.permute.xlu0 0
        %1417 = vperm.xlu0 %1416, %v788
        %v1418 = vpop.permute.xlu0 %1417
        %1421 = vset.pattern.permute.xlu0 0
        %1422 = vperm.xlu0 %1421, %v803
        %v1423 = vpop.permute.xlu0 %1422
        %1426 = vset.pattern.permute.xlu0 0
        %1427 = vperm.xlu0 %1426, %v818
        %v1428 = vpop.permute.xlu0 %1427
        %1431 = vset.pattern.permute.xlu0 0
        %1432 = vperm.xlu0 %1431, %v833
        %v1433 = vpop.permute.xlu0 %1432
        %1436 = vset.pattern.permute.xlu0 0
        %1437 = vperm.xlu0 %1436, %v848
        %v1438 = vpop.permute.xlu0 %1437
        %1441 = vset.pattern.permute.xlu0 0
        %1442 = vperm.xlu0 %1441, %v863
        %v1443 = vpop.permute.xlu0 %1442
        %1446 = vset.pattern.permute.xlu0 0
        %1447 = vperm.xlu0 %1446, %v878
        %v1448 = vpop.permute.xlu0 %1447
        %1451 = vset.pattern.permute.xlu0 0
        %1452 = vperm.xlu0 %1451, %v893
        %v1453 = vpop.permute.xlu0 %1452
        %1456 = vset.pattern.permute.xlu0 0
        %1457 = vperm.xlu0 %1456, %v908
        %v1458 = vpop.permute.xlu0 %1457
        %1461 = vset.pattern.permute.xlu0 0
        %1462 = vperm.xlu0 %1461, %v923
        %v1463 = vpop.permute.xlu0 %1462
        %1466 = vset.pattern.permute.xlu0 0
        %1467 = vperm.xlu0 %1466, %v938
        %v1468 = vpop.permute.xlu0 %1467
        %1471 = vset.pattern.permute.xlu0 0
        %1472 = vperm.xlu0 %1471, %v953
        %v1473 = vpop.permute.xlu0 %1472
        %v1475 = vmul.f32 %v314, %v1398
        %v1476 = vmul.f32 %v315, %v1398
        %v1477 = vmul.f32 %v316, %v1403
        %v1478 = vmul.f32 %v317, %v1403
        %v1479 = vmul.f32 %v318, %v1408
        %v1480 = vmul.f32 %v319, %v1408
        %v1481 = vmul.f32 %v320, %v1413
        %v1482 = vmul.f32 %v321, %v1413
        %v1483 = vmul.f32 %v322, %v1418
        %v1484 = vmul.f32 %v323, %v1418
        %v1485 = vmul.f32 %v324, %v1423
        %v1486 = vmul.f32 %v325, %v1423
        %v1487 = vmul.f32 %v326, %v1428
        %v1488 = vmul.f32 %v327, %v1428
        %v1489 = vmul.f32 %v328, %v1433
        %v1490 = vmul.f32 %v329, %v1433
        %v1491 = vmul.f32 %v330, %v1438
        %v1492 = vmul.f32 %v331, %v1438
        %v1493 = vmul.f32 %v332, %v1443
        %v1494 = vmul.f32 %v333, %v1443
        %v1495 = vmul.f32 %v334, %v1448
        %v1496 = vmul.f32 %v335, %v1448
        %v1497 = vmul.f32 %v336, %v1453
        %v1498 = vmul.f32 %v337, %v1453
        %v1499 = vmul.f32 %v338, %v1458
        %v1500 = vmul.f32 %v339, %v1458
        %v1501 = vmul.f32 %v340, %v1463
        %v1502 = vmul.f32 %v341, %v1463
        %v1503 = vmul.f32 %v342, %v1468
        %v1504 = vmul.f32 %v343, %v1468
        %v1505 = vmul.f32 %v344, %v1473
        %v1506 = vmul.f32 %v345, %v1473
        %1508 = vset.pattern.permute.xlu0 0
        %1509 = vperm.xlu0 %1508, %v1169
        %v1510 = vpop.permute.xlu0 %1509
        %1513 = vset.pattern.permute.xlu0 0
        %1514 = vperm.xlu0 %1513, %v1184
        %v1515 = vpop.permute.xlu0 %1514
        %1518 = vset.pattern.permute.xlu0 0
        %1519 = vperm.xlu0 %1518, %v1199
        %v1520 = vpop.permute.xlu0 %1519
        %1523 = vset.pattern.permute.xlu0 0
        %1524 = vperm.xlu0 %1523, %v1214
        %v1525 = vpop.permute.xlu0 %1524
        %1528 = vset.pattern.permute.xlu0 0
        %1529 = vperm.xlu0 %1528, %v1229
        %v1530 = vpop.permute.xlu0 %1529
        %1533 = vset.pattern.permute.xlu0 0
        %1534 = vperm.xlu0 %1533, %v1244
        %v1535 = vpop.permute.xlu0 %1534
        %1538 = vset.pattern.permute.xlu0 0
        %1539 = vperm.xlu0 %1538, %v1259
        %v1540 = vpop.permute.xlu0 %1539
        %1543 = vset.pattern.permute.xlu0 0
        %1544 = vperm.xlu0 %1543, %v1274
        %v1545 = vpop.permute.xlu0 %1544
        %1548 = vset.pattern.permute.xlu0 0
        %1549 = vperm.xlu0 %1548, %v1289
        %v1550 = vpop.permute.xlu0 %1549
        %1553 = vset.pattern.permute.xlu0 0
        %1554 = vperm.xlu0 %1553, %v1304
        %v1555 = vpop.permute.xlu0 %1554
        %1558 = vset.pattern.permute.xlu0 0
        %1559 = vperm.xlu0 %1558, %v1319
        %v1560 = vpop.permute.xlu0 %1559
        %1563 = vset.pattern.permute.xlu0 0
        %1564 = vperm.xlu0 %1563, %v1334
        %v1565 = vpop.permute.xlu0 %1564
        %1568 = vset.pattern.permute.xlu0 0
        %1569 = vperm.xlu0 %1568, %v1349
        %v1570 = vpop.permute.xlu0 %1569
        %1573 = vset.pattern.permute.xlu0 0
        %1574 = vperm.xlu0 %1573, %v1364
        %v1575 = vpop.permute.xlu0 %1574
        %1578 = vset.pattern.permute.xlu0 0
        %1579 = vperm.xlu0 %1578, %v1379
        %v1580 = vpop.permute.xlu0 %1579
        %1583 = vset.pattern.permute.xlu0 0
        %1584 = vperm.xlu0 %1583, %v1394
        %v1585 = vpop.permute.xlu0 %1584
        %v1587 = vmul.f32 %v346, %v1510
        %v1588 = vmul.f32 %v347, %v1510
        %v1589 = vmul.f32 %v348, %v1515
        %v1590 = vmul.f32 %v349, %v1515
        %v1591 = vmul.f32 %v350, %v1520
        %v1592 = vmul.f32 %v351, %v1520
        %v1593 = vmul.f32 %v352, %v1525
        %v1594 = vmul.f32 %v353, %v1525
        %v1595 = vmul.f32 %v354, %v1530
        %v1596 = vmul.f32 %v355, %v1530
        %v1597 = vmul.f32 %v356, %v1535
        %v1598 = vmul.f32 %v357, %v1535
        %v1599 = vmul.f32 %v358, %v1540
        %v1600 = vmul.f32 %v359, %v1540
        %v1601 = vmul.f32 %v360, %v1545
        %v1602 = vmul.f32 %v361, %v1545
        %v1603 = vmul.f32 %v362, %v1550
        %v1604 = vmul.f32 %v363, %v1550
        %v1605 = vmul.f32 %v364, %v1555
        %v1606 = vmul.f32 %v365, %v1555
        %v1607 = vmul.f32 %v366, %v1560
        %v1608 = vmul.f32 %v367, %v1560
        %v1609 = vmul.f32 %v368, %v1565
        %v1610 = vmul.f32 %v369, %v1565
        %v1611 = vmul.f32 %v370, %v1570
        %v1612 = vmul.f32 %v371, %v1570
        %v1613 = vmul.f32 %v372, %v1575
        %v1614 = vmul.f32 %v373, %v1575
        %v1615 = vmul.f32 %v374, %v1580
        %v1616 = vmul.f32 %v375, %v1580
        %v1617 = vmul.f32 %v376, %v1585
        %v1618 = vmul.f32 %v377, %v1585
        %v1619 = vadd.f32 %v1475, %v1587
        %v1620 = vadd.f32 %v1476, %v1588
        %v1621 = vadd.f32 %v1477, %v1589
        %v1622 = vadd.f32 %v1478, %v1590
        %v1623 = vadd.f32 %v1479, %v1591
        %v1624 = vadd.f32 %v1480, %v1592
        %v1625 = vadd.f32 %v1481, %v1593
        %v1626 = vadd.f32 %v1482, %v1594
        %v1627 = vadd.f32 %v1483, %v1595
        %v1628 = vadd.f32 %v1484, %v1596
        %v1629 = vadd.f32 %v1485, %v1597
        %v1630 = vadd.f32 %v1486, %v1598
        %v1631 = vadd.f32 %v1487, %v1599
        %v1632 = vadd.f32 %v1488, %v1600
        %v1633 = vadd.f32 %v1489, %v1601
        %v1634 = vadd.f32 %v1490, %v1602
        %v1635 = vadd.f32 %v1491, %v1603
        %v1636 = vadd.f32 %v1492, %v1604
        %v1637 = vadd.f32 %v1493, %v1605
        %v1638 = vadd.f32 %v1494, %v1606
        %v1639 = vadd.f32 %v1495, %v1607
        %v1640 = vadd.f32 %v1496, %v1608
        %v1641 = vadd.f32 %v1497, %v1609
        %v1642 = vadd.f32 %v1498, %v1610
        %v1643 = vadd.f32 %v1499, %v1611
        %v1644 = vadd.f32 %v1500, %v1612
        %v1645 = vadd.f32 %v1501, %v1613
        %v1646 = vadd.f32 %v1502, %v1614
        %v1647 = vadd.f32 %v1503, %v1615
        %v1648 = vadd.f32 %v1504, %v1616
        %v1649 = vadd.f32 %v1505, %v1617
        %v1650 = vadd.f32 %v1506, %v1618
        %1651 = vst [vmem:[%s313] sm:$0xff] %v1619
        %1652 = vst [vmem:[%s313 + $0x8] sm:$0xff] %v1620
        %1653 = vst [vmem:[%s313 + $0x10] sm:$0xff] %v1621
        %1654 = vst [vmem:[%s313 + $0x18] sm:$0xff] %v1622
        %1655 = vst [vmem:[%s313 + $0x20] sm:$0xff] %v1623
        %1656 = vst [vmem:[%s313 + $0x28] sm:$0xff] %v1624
        %1657 = vst [vmem:[%s313 + $0x30] sm:$0xff] %v1625
        %1658 = vst [vmem:[%s313 + $0x38] sm:$0xff] %v1626
        %1659 = vst [vmem:[%s313 + $0x40] sm:$0xff] %v1627
        %1660 = vst [vmem:[%s313 + $0x48] sm:$0xff] %v1628
        %1661 = vst [vmem:[%s313 + $0x50] sm:$0xff] %v1629
        %1662 = vst [vmem:[%s313 + $0x58] sm:$0xff] %v1630
        %1663 = vst [vmem:[%s313 + $0x60] sm:$0xff] %v1631
        %1664 = vst [vmem:[%s313 + $0x68] sm:$0xff] %v1632
        %1665 = vst [vmem:[%s313 + $0x70] sm:$0xff] %v1633
        %1666 = vst [vmem:[%s313 + $0x78] sm:$0xff] %v1634
        %1667 = vst [vmem:[%s313 + $0x80] sm:$0xff] %v1635
        %1668 = vst [vmem:[%s313 + $0x88] sm:$0xff] %v1636
        %1669 = vst [vmem:[%s313 + $0x90] sm:$0xff] %v1637
        %1670 = vst [vmem:[%s313 + $0x98] sm:$0xff] %v1638
        %1671 = vst [vmem:[%s313 + $0xa0] sm:$0xff] %v1639
        %1672 = vst [vmem:[%s313 + $0xa8] sm:$0xff] %v1640
        %1673 = vst [vmem:[%s313 + $0xb0] sm:$0xff] %v1641
        %1674 = vst [vmem:[%s313 + $0xb8] sm:$0xff] %v1642
        %1675 = vst [vmem:[%s313 + $0xc0] sm:$0xff] %v1643
        %1676 = vst [vmem:[%s313 + $0xc8] sm:$0xff] %v1644
        %1677 = vst [vmem:[%s313 + $0xd0] sm:$0xff] %v1645
        %1678 = vst [vmem:[%s313 + $0xd8] sm:$0xff] %v1646
        %1679 = vst [vmem:[%s313 + $0xe0] sm:$0xff] %v1647
        %1680 = vst [vmem:[%s313 + $0xe8] sm:$0xff] %v1648
        %1681 = vst [vmem:[%s313 + $0xf0] sm:$0xff] %v1649
        %1682 = vst [vmem:[%s313 + $0xf8] sm:$0xff] %v1650
        %s1683 = sand.u32 %s170, 1
        %s1684 = scalar_lea.sflag [#allocation4], %s1683
        %s1685 = sand.u32 %s170, 1
        %s1686 = smul.addr %s1685, 256
        %s1687 = scalar_lea.vmem [#allocation7], %s1686
        // Predicated region
        $region53: #{tpu_custom_call.1} parent=43 // pred_check
          %p1688 = pneg %p180
        $region54: #{tpu_custom_call.1} parent=43 // pred_check_branch
          %1690 = sbr.rel (%p1688) target = $region56
        $region55: #{tpu_custom_call.1} parent=43 // pred_region
          %1692 = vsyncadd %s1684, 0
          %s1693 = smul.addr %s26, 32
          %s1694 = smul.addr %s1693, 8
          %s1695 = scalar_lea.hbm %s6, %s1694
          %s1696 = sshll.u32 %s1687, 4
          %s1697 = int_to_ptr.vmem [resolvable:$true] %s1696
          %s1698 = sshll.u32 %s1695, 4
          %s1699 = int_to_ptr.hbm [resolvable:$true] %s1698
          %1704 = dma.vmem_to_hbm [thread:$0]  %s1697, 4096, %s1699, %s1684, 256, 256, 16
        $region56: #{tpu_custom_call.1} parent=43 // pred_fallthru
          _
      $region44: #{tpu_custom_call.1} parent=5 // pred_fallthru
        _
      %p1705 = scmp.le.s32.totalorder 2, %s21
      // Predicated region
      $region57: #{tpu_custom_call.1} parent=5 // pred_check
        %p1706 = pneg %p1705
      $region58: #{tpu_custom_call.1} parent=5 // pred_check_branch
        %1708 = sbr.rel (%p1706) target = $region60
      $region59: #{tpu_custom_call.1} parent=5 // pred_region
        %s1709 = ssub.s32 %s21, 2
        // Predicated region
        $region61: #{tpu_custom_call.1} parent=59 // pred_check
          %p1710 = pneg %p186
        $region62: #{tpu_custom_call.1} parent=59 // pred_check_branch
          %1712 = sbr.rel (%p1710) target = $region64
        $region63: #{tpu_custom_call.1} parent=59 // pred_region
          %s1713 = sand.u32 %s171, 1
          %s1714 = scalar_lea.sflag [#allocation4], %s1713
          %s1715 = sand.u32 %s171, 1
          %s1716 = smul.addr %s1715, 256
          %s1717 = scalar_lea.vmem [#allocation7], %s1716
          %1719 = dma.done %s1714, 4096
        $region64: #{tpu_custom_call.1} parent=59 // pred_fallthru
          _
      $region60: #{tpu_custom_call.1} parent=5 // pred_fallthru
        _
    $region6: #{tpu_custom_call.1} parent=1 // loop_footer
      %s25 = sadd.s32 1, %s21
    $region7: #{tpu_custom_call.1} parent=1 // loop_footer_branch
      %20 = sbr.rel target = $region3
    $region8: #{tpu_custom_call.1} parent=1 // loop_exit
      _
    %1720 = vsyncpa [#allocation3], 1
    %s1721 = scalar_lea.sflag [#allocation3], 1
    %1722 = vsyncpa %s1721, 1
    %1723 = vsyncpa [#allocation6], 1
    %s1724 = scalar_lea.sflag [#allocation6], 1
    %1725 = vsyncpa %s1724, 1
    %1726 = vsyncpa [#allocation4], 1
    %s1727 = scalar_lea.sflag [#allocation4], 1
    %1728 = vsyncpa %s1727, 1

</llo_original>
